<compile_context>
chip_gen: v7x
topology: tpu7x:2x2x1
jax: 0.10.0
libtpu: 0.0.40
codegen_flags: <defaults>
</compile_context>

<pallas_src>
import functools

import jax
import jax.numpy as jnp
from jax.experimental import pallas as pl
from jax.experimental.pallas import tpu as pltpu


def _choose_block_q(n_pad, target):
    """Largest multiple of 128 that divides n_pad and is <= target (min 128)."""
    best = 128
    for bq in range(128, min(target, n_pad) + 1, 128):
        if n_pad % bq == 0:
            best = bq
    return best


def _sa_kernel(v_mapping, block_q, n_valid, approx_recip, *refs):
    if v_mapping:
        (xq_ref, xcn_ref, wq_ref, bq_ref, wkt_ref, bk_ref,
         wvt_ref, bv_ref, wot_ref, bo_ref,
         gamma_ref, out_ref, attn_ref, k_sc, v_sc) = refs
    else:
        (xq_ref, xcn_ref, wq_ref, bq_ref, wkt_ref, bk_ref,
         gamma_ref, out_ref, attn_ref, k_sc, v_sc) = refs
        wvt_ref = bv_ref = wot_ref = bo_ref = None

    md = k_sc.dtype                      # matmul dtype (weights are pre-cast)
    n_pad = k_sc.shape[1]
    t = pl.program_id(1)

    # --- K and (o_proj-folded) V caches: one pass per batch element (tile 0). ---
    @pl.when(t == 0)
    def _():
        x_cn = xcn_ref[0]                                            # (C, N_pad) f32
        x_md = x_cn.astype(md)
        k = jnp.dot(wkt_ref[...], x_md,
                    preferred_element_type=jnp.float32) + bk_ref[...]
        k_sc[...] = k.astype(md)                                     # (k, N_pad)
        if v_mapping:
            v = jnp.dot(wvt_ref[...], x_md,
                        preferred_element_type=jnp.float32) + bv_ref[...]
            vo = jnp.dot(wot_ref[...], v.astype(md),                 # fold o_proj weight
                         preferred_element_type=jnp.float32)
            v_sc[...] = vo.astype(md)                                # (C, N_pad)
        else:
            v_sc[...] = x_md                                         # V = x

    q_start = pl.multiple_of(t * block_q, block_q)

    # --- Q projection for this query slab only. ---
    x_slab_nc = xq_ref[0]                                            # (TQ, C) f32
    q = jnp.dot(x_slab_nc.astype(md), wq_ref[...],
                preferred_element_type=jnp.float32) + bq_ref[...]    # (TQ, q)

    # energy[i, j] = <q_i, k_j>  (K cached transposed -> standard matmul).
    energy = jnp.dot(q.astype(md), k_sc[...],
                     preferred_element_type=jnp.float32)             # (TQ, N_pad)

    if n_valid < n_pad:                 # mask zero-padded key columns (static)
        col = jax.lax.broadcasted_iota(jnp.int32, energy.shape, 1)
        energy = jnp.where(col < n_valid, energy, -1e30)

    # Row softmax over the full key extent (lane reductions).
    m = jnp.max(energy, axis=-1, keepdims=True)
    e = jnp.exp(energy - m)
    denom = jnp.sum(e, axis=-1, keepdims=True)
    if approx_recip:
        attn = e * pl.reciprocal(denom, approx=True)                 # EUP reciprocal
    else:
        attn = e / denom                                             # exact softmax
    attn_ref[0] = attn.astype(attn_ref.dtype)

    # out^T slab (lane-dense (C, TQ)): (Wo V) @ attn^T, contraction over keys.
    o_t = jax.lax.dot_general(
        v_sc[...], attn.astype(md),
        dimension_numbers=(((1,), (1,)), ((), ())),
        preferred_element_type=jnp.float32)                          # (C, TQ)
    if v_mapping:
        o_t = o_t + bo_ref[...]                                      # o_proj bias (C, 1)
    # TODO(synk): on v7x, this attn @ V matmul (contraction over N) could use the
    # fp8 MXU path for ~2x MXU throughput.

    gamma = gamma_ref[0, 0]                                          # scalar from SMEM
    x_slab_cn = xcn_ref[0, :, pl.ds(q_start, block_q)]               # (C, TQ) residual
    out_ref[0] = (gamma * o_t + x_slab_cn).astype(out_ref.dtype)


def self_attention_pallas(x_nchw, params, *, v_mapping=True, block_q=None,
                          matmul_dtype=jnp.bfloat16, attn_dtype=jnp.bfloat16):
    """x_nchw: (B, C, W, H) f32. Returns (out_nchw f32, attention (B, N, N))."""
    B, C, W, H = x_nchw.shape
    N = W * H
    N_pad = ((N + 127) // 128) * 128
    q_dim = params["wq"].shape[1]
    k_dim = params["wk"].shape[1]
    v_dim = params["wv"].shape[1]
    assert q_dim == k_dim, "torch.bmm(Q, K) requires q_dim == k_dim"

    # Per-chip tiling / VMEM budget (v7x: 64 MiB VMEM/TC, v5e/v6e: 128 MiB).
    try:
        vmem_cap = int(pltpu.get_tpu_info().vmem_capacity_bytes)
    except Exception:
        vmem_cap = 128 * 1024 * 1024
    target_bq = 256 if vmem_cap <= 64 * 1024 * 1024 else 512
    if block_q is None or block_q % 128 != 0 or N_pad % block_q != 0:
        block_q = _choose_block_q(
            N_pad, target_bq if block_q is None else max(128, block_q))
    nq = N_pad // block_q

    # NCHW -> (B, C, N_pad) (lane-dense) and (B, N_pad, C) (row-major queries).
    x_bcn = x_nchw.reshape(B, C, N)
    if N_pad != N:
        x_bcn = jnp.pad(x_bcn, ((0, 0), (0, 0), (0, N_pad - N)))
    x_bnc = jnp.transpose(x_bcn, (0, 2, 1))

    # Pre-cast / pre-transpose weights to the MXU dtype (no per-tile casts).
    wq = params["wq"].astype(matmul_dtype)            # (C, q)
    wk_t = params["wk"].T.astype(matmul_dtype)        # (k, C)
    bk_col = params["bk"].T                           # (k, 1) f32
    if v_mapping:
        wv_t = params["wv"].T.astype(matmul_dtype)    # (v, C)
        bv_col = params["bv"].T                       # (v, 1) f32
        wo_t = params["wo"].T.astype(matmul_dtype)    # (C, v)
        bo_col = params["bo"].T                       # (C, 1) f32

    approx_recip = jnp.dtype(attn_dtype) != jnp.float32
    kernel = functools.partial(_sa_kernel, v_mapping, block_q, N, approx_recip)

    inputs = [x_bnc, x_bcn, wq, params["bq"], wk_t, bk_col]
    in_specs = [
        pl.BlockSpec((1, block_q, C), lambda b, t: (b, t, 0)),   # x slab (queries)
        pl.BlockSpec((1, C, N_pad), lambda b, t: (b, 0, 0)),     # x (C,N), per-batch resident
        pl.BlockSpec((C, q_dim), lambda b, t: (0, 0)),           # wq
        pl.BlockSpec((1, q_dim), lambda b, t: (0, 0)),           # bq (row)
        pl.BlockSpec((k_dim, C), lambda b, t: (0, 0)),           # wk^T
        pl.BlockSpec((k_dim, 1), lambda b, t: (0, 0)),           # bk (col)
    ]
    # TODO(synk): if VMEM is tight on v7x, set pipeline_mode=pl.Buffered(1) on the
    # resident x (C,N) BlockSpec (its block index is constant across the tile axis).
    if v_mapping:
        inputs += [wv_t, bv_col, wo_t, bo_col]
        in_specs += [
            pl.BlockSpec((v_dim, C), lambda b, t: (0, 0)),       # wv^T
            pl.BlockSpec((v_dim, 1), lambda b, t: (0, 0)),       # bv (col)
            pl.BlockSpec((C, v_dim), lambda b, t: (0, 0)),       # wo^T
            pl.BlockSpec((C, 1), lambda b, t: (0, 0)),           # bo (col)
        ]
    inputs.append(params["gamma"])
    in_specs.append(pl.BlockSpec(memory_space=pltpu.MemorySpace.SMEM))  # gamma scalar

    md_size = jnp.dtype(matmul_dtype).itemsize
    attn_size = jnp.dtype(attn_dtype).itemsize
    est = (2 * block_q * C * 4                        # x query-slab blocks
           + 2 * N_pad * C * 4                        # x (C,N) resident blocks
           + 2 * C * block_q * 4                      # out blocks
           + 2 * block_q * N_pad * attn_size          # attn blocks
           + N_pad * (k_dim + C) * md_size            # K / folded-V caches
           + 6 * block_q * N_pad * 4                  # live energy/exp/attn slabs
           + 4 * (C * (q_dim + k_dim + 2 * v_dim)) * md_size  # weights
           + (1 << 20))
    cap_limit = min(max(vmem_cap - 8 * 1024 * 1024, 32 * 1024 * 1024),
                    100 * 1024 * 1024)
    vmem_limit = int(min(cap_limit, max(32 * 1024 * 1024, 2 * est)))

    # TODO(synk): v5e callers that never consume the attention map should get a
    # flag to skip the (B, N, N) writeback entirely (largest HBM cost there).
    # TODO(synk): for B == 1 on v7x, split query tiles across the two TensorCores
    # (per-core K/V scratch) to keep both cores busy.
    out_bcn, attn = pl.pallas_call(
        kernel,
        out_shape=(
            jax.ShapeDtypeStruct((B, C, N_pad), jnp.float32),
            jax.ShapeDtypeStruct((B, N_pad, N_pad), attn_dtype),
        ),
        grid_spec=pltpu.PrefetchScalarGridSpec(
            num_scalar_prefetch=0,
            grid=(B, nq),
            in_specs=in_specs,
            out_specs=[
                pl.BlockSpec((1, C, block_q), lambda b, t: (b, 0, t)),   # lane-dense out
                pl.BlockSpec((1, block_q, N_pad), lambda b, t: (b, t, 0)),
            ],
            scratch_shapes=[
                pltpu.VMEM((k_dim, N_pad), matmul_dtype),   # K cache (transposed)
                pltpu.VMEM((C, N_pad), matmul_dtype),       # o_proj-folded V cache
            ],
        ),
        compiler_params=pltpu.CompilerParams(
            dimension_semantics=("parallel", "arbitrary"),
            vmem_limit_bytes=vmem_limit),
    )(*inputs)

    if N_pad != N:
        out_bcn = out_bcn[:, :, :N]
        attn = attn[:, :N, :N]
    out_nchw = out_bcn.reshape(B, C, W, H)
    return out_nchw, attn


def self_attention_ref(x_nchw, params, *, v_mapping=True):
    """Pure-JAX reference matching the PyTorch forward."""
    B, C, W, H = x_nchw.shape
    N = W * H
    x_bcn = x_nchw.reshape(B, C, N)

    def conv1x1(xcn, w, b):  # w: (Cin, Cout), b: (1, Cout) -> (B, Cout, N)
        return jnp.einsum("bcn,co->bon", xcn, w) + b[0][None, :, None]

    q = conv1x1(x_bcn, params["wq"], params["bq"])        # (B, q, N)
    k = conv1x1(x_bcn, params["wk"], params["bk"])        # (B, k, N)
    energy = jnp.einsum("bqn,bqm->bnm", q, k)             # (B, N, N)
    attn = jax.nn.softmax(energy, axis=-1)
    if v_mapping:
        v = conv1x1(x_bcn, params["wv"], params["bv"])    # (B, v, N)
    else:
        v = x_bcn
    out = jnp.einsum("bvm,bnm->bvn", v, attn)             # bmm(V, attn^T)
    if v_mapping:
        out = conv1x1(out, params["wo"], params["bo"])    # (B, C, N)
    out = params["gamma"][0, 0] * out + x_bcn
    return out.reshape(B, C, W, H), attn


def make_params(key, in_dim, q_dim, k_dim, v_dim):
    ks = jax.random.split(key, 8)
    scale = 0.1
    # Conv2d weight (out, in, 1, 1) stored transposed as (in, out) for x @ W.
    return {
        "wq": scale * jax.random.normal(ks[0], (in_dim, q_dim), jnp.float32),
        "bq": scale * jax.random.normal(ks[1], (1, q_dim), jnp.float32),
        "wk": scale * jax.random.normal(ks[2], (in_dim, k_dim), jnp.float32),
        "bk": scale * jax.random.normal(ks[3], (1, k_dim), jnp.float32),
        "wv": scale * jax.random.normal(ks[4], (in_dim, v_dim), jnp.float32),
        "bv": scale * jax.random.normal(ks[5], (1, v_dim), jnp.float32),
        "wo": scale * jax.random.normal(ks[6], (v_dim, in_dim), jnp.float32),
        "bo": scale * jax.random.normal(ks[7], (1, in_dim), jnp.float32),
        # nn.Parameter(torch.zeros(1)); nonzero here so the attention path is
        # actually exercised in the output check.
        "gamma": jnp.full((1, 1), 0.5, jnp.float32),
    }


if __name__ == "__main__":
    B, C, W, H = 2, 4, 16, 16
    q_dim = k_dim = 8
    v_dim = 8

    key = jax.random.PRNGKey(0)
    kx, kp = jax.random.split(key)
    x = jax.random.normal(kx, (B, C, W, H), jnp.float32)
    params = make_params(kp, C, q_dim, k_dim, v_dim)
    N = W * H

    out_r, attn_r = self_attention_ref(x, params, v_mapping=True)

    # 1) exact path (f32 MXU inputs, f32 attention, exact divide), 2 query tiles.
    out, attn = self_attention_pallas(x, params, v_mapping=True, block_q=128,
                                      matmul_dtype=jnp.float32,
                                      attn_dtype=jnp.float32)
    out = jax.block_until_ready(out)
    attn = jax.block_until_ready(attn)
    assert out.shape == (B, C, W, H) and attn.shape == (B, N, N)
    assert jnp.allclose(out, out_r, atol=2e-3, rtol=2e-3)
    assert jnp.allclose(attn, attn_r, atol=2e-3, rtol=2e-3)
    assert jnp.allclose(jnp.sum(attn, axis=-1), 1.0, atol=1e-5)

    # 2) default perf config (bf16 MXU inputs + bf16 attention writeback).
    out_bf, attn_bf = self_attention_pallas(x, params, v_mapping=True, block_q=128)
    out_bf = jax.block_until_ready(out_bf)
    attn_bf = jax.block_until_ready(attn_bf)
    assert jnp.allclose(out_bf, out_r, atol=3e-2, rtol=3e-2)
    assert jnp.allclose(attn_bf.astype(jnp.float32), attn_r, atol=3e-2, rtol=3e-2)

    # 3) v_mapping=False branch (V = x; no value/output projection weights DMA'd).
    out2, attn2 = self_attention_pallas(x, params, v_mapping=False, block_q=128,
                                        matmul_dtype=jnp.float32,
                                        attn_dtype=jnp.float32)
    out2 = jax.block_until_ready(out2)
    out2_r, attn2_r = self_attention_ref(x, params, v_mapping=False)
    assert jnp.allclose(out2, out2_r, atol=2e-3, rtol=2e-3)
    assert jnp.allclose(attn2, attn2_r, atol=2e-3, rtol=2e-3)

    # 4) non-128-multiple spatial size (N = 100 padded to 128, padded keys masked).
    xs = jax.random.normal(jax.random.PRNGKey(1), (B, C, 10, 10), jnp.float32)
    out3, attn3 = self_attention_pallas(xs, params, v_mapping=True,
                                        matmul_dtype=jnp.float32,
                                        attn_dtype=jnp.float32)
    out3 = jax.block_until_ready(out3)
    out3_r, attn3_r = self_attention_ref(xs, params, v_mapping=True)
    assert out3.shape == (B, C, 10, 10) and attn3.shape == (B, 100, 100)
    assert jnp.allclose(out3, out3_r, atol=2e-3, rtol=2e-3)
    assert jnp.allclose(attn3, attn3_r, atol=2e-3, rtol=2e-3)

    print("KERNEL_OK")
</pallas_src>

<mosaic_0001>
module attributes {stable_mosaic.version = 11 : i64} {
  func.func @_sa_kernel(%arg0: i32, %arg1: i32, %arg2: memref<1x128x4xf32, #tpu.memory_space<vmem>>, %arg3: memref<1x4x256xf32, #tpu.memory_space<vmem>>, %arg4: memref<4x8xf32, #tpu.memory_space<vmem>>, %arg5: memref<1x8xf32, #tpu.memory_space<vmem>>, %arg6: memref<8x4xf32, #tpu.memory_space<vmem>>, %arg7: memref<8x1xf32, #tpu.memory_space<vmem>>, %arg8: memref<8x4xf32, #tpu.memory_space<vmem>>, %arg9: memref<8x1xf32, #tpu.memory_space<vmem>>, %arg10: memref<4x8xf32, #tpu.memory_space<vmem>>, %arg11: memref<4x1xf32, #tpu.memory_space<vmem>>, %arg12: memref<1x1xf32, #tpu.memory_space<smem>>, %arg13: memref<1x4x128xf32, #tpu.memory_space<vmem>>, %arg14: memref<1x128x256xf32, #tpu.memory_space<vmem>>, %arg15: memref<8x256xf32, #tpu.memory_space<vmem>>, %arg16: memref<4x256xf32, #tpu.memory_space<vmem>>) attributes {dimension_semantics = [#tpu.dimension_semantics<parallel>, #tpu.dimension_semantics<arbitrary>], iteration_bounds = array<i64: 2, 2>, scalar_prefetch = 0 : i64, scratch_operands = 2 : i64, tpu.core_type = #tpu.core_type<tc>, window_params = [{transform_indices = @transform_0, window_bounds = array<i64: 1, 128, 4>}, {transform_indices = @transform_1, window_bounds = array<i64: 1, 4, 256>}, {pipeline_mode = #tpu.pipeline_mode<synchronous>, transform_indices = @transform_2, window_bounds = array<i64: 4, 8>}, {pipeline_mode = #tpu.pipeline_mode<synchronous>, transform_indices = @transform_3, window_bounds = array<i64: 1, 8>}, {pipeline_mode = #tpu.pipeline_mode<synchronous>, transform_indices = @transform_4, window_bounds = array<i64: 8, 4>}, {pipeline_mode = #tpu.pipeline_mode<synchronous>, transform_indices = @transform_5, window_bounds = array<i64: 8, 1>}, {pipeline_mode = #tpu.pipeline_mode<synchronous>, transform_indices = @transform_6, window_bounds = array<i64: 8, 4>}, {pipeline_mode = #tpu.pipeline_mode<synchronous>, transform_indices = @transform_7, window_bounds = array<i64: 8, 1>}, {pipeline_mode = #tpu.pipeline_mode<synchronous>, transform_indices = @transform_8, window_bounds = array<i64: 4, 8>}, {pipeline_mode = #tpu.pipeline_mode<synchronous>, transform_indices = @transform_9, window_bounds = array<i64: 4, 1>}, {transform_indices = @transform_10, window_bounds = array<i64: 1, 1>}, {transform_indices = @transform_11, window_bounds = array<i64: 1, 4, 128>}, {transform_indices = @transform_12, window_bounds = array<i64: 1, 128, 256>}]} {
    %c0_i32 = arith.constant 0 : i32
    %0 = arith.cmpi eq, %arg1, %c0_i32 : i32
    %1 = arith.extui %0 : i1 to i32
    %c0_i32_0 = arith.constant 0 : i32
    %2 = arith.cmpi ne, %1, %c0_i32_0 : i32
    scf.if %2 {
      %c0_27 = arith.constant 0 : index
      %c0_28 = arith.constant 0 : index
      %c0_29 = arith.constant 0 : index
      %41 = vector.load %arg3[%c0_27, %c0_28, %c0_29] : memref<1x4x256xf32, #tpu.memory_space<vmem>>, vector<1x4x256xf32>
      %42 = vector.shape_cast %41 : vector<1x4x256xf32> to vector<4x256xf32>
      %c0_30 = arith.constant 0 : index
      %c0_31 = arith.constant 0 : index
      %43 = vector.load %arg6[%c0_30, %c0_31] : memref<8x4xf32, #tpu.memory_space<vmem>>, vector<8x4xf32>
      %cst_32 = arith.constant dense<0.000000e+00> : vector<8x256xf32>
      %44 = tpu.matmul %43, %42, %cst_32 {dimension_numbers = #tpu.dot_dimension_numbers<[1], [0], [0], [1], [0, 0, 1, 1], [], []>} : vector<8x4xf32>, vector<4x256xf32>, vector<8x256xf32> -> vector<8x256xf32>
      %c0_33 = arith.constant 0 : index
      %c0_34 = arith.constant 0 : index
      %45 = vector.load %arg7[%c0_33, %c0_34] : memref<8x1xf32, #tpu.memory_space<vmem>>, vector<8x1xf32>
      %46 = vector.broadcast %45 : vector<8x1xf32> to vector<8x256xf32>
      %47 = arith.addf %44, %46 : vector<8x256xf32>
      %c0_35 = arith.constant 0 : index
      %c0_36 = arith.constant 0 : index
      %48 = vector.load %arg15[%c0_35, %c0_36] : memref<8x256xf32, #tpu.memory_space<vmem>>, vector<8x256xf32>
      tpu.vector_store %arg15[%c0_35, %c0_36], %47 {strides = array<i32>} : memref<8x256xf32, #tpu.memory_space<vmem>>, vector<8x256xf32>,
      %c0_37 = arith.constant 0 : index
      %c0_38 = arith.constant 0 : index
      %49 = vector.load %arg8[%c0_37, %c0_38] : memref<8x4xf32, #tpu.memory_space<vmem>>, vector<8x4xf32>
      %cst_39 = arith.constant dense<0.000000e+00> : vector<8x256xf32>
      %50 = tpu.matmul %49, %42, %cst_39 {dimension_numbers = #tpu.dot_dimension_numbers<[1], [0], [0], [1], [0, 0, 1, 1], [], []>} : vector<8x4xf32>, vector<4x256xf32>, vector<8x256xf32> -> vector<8x256xf32>
      %c0_40 = arith.constant 0 : index
      %c0_41 = arith.constant 0 : index
      %51 = vector.load %arg9[%c0_40, %c0_41] : memref<8x1xf32, #tpu.memory_space<vmem>>, vector<8x1xf32>
      %52 = vector.broadcast %51 : vector<8x1xf32> to vector<8x256xf32>
      %53 = arith.addf %50, %52 : vector<8x256xf32>
      %c0_42 = arith.constant 0 : index
      %c0_43 = arith.constant 0 : index
      %54 = vector.load %arg10[%c0_42, %c0_43] : memref<4x8xf32, #tpu.memory_space<vmem>>, vector<4x8xf32>
      %cst_44 = arith.constant dense<0.000000e+00> : vector<4x256xf32>
      %55 = tpu.matmul %54, %53, %cst_44 {dimension_numbers = #tpu.dot_dimension_numbers<[1], [0], [0], [1], [0, 0, 1, 1], [], []>} : vector<4x8xf32>, vector<8x256xf32>, vector<4x256xf32> -> vector<4x256xf32>
      %c0_45 = arith.constant 0 : index
      %c0_46 = arith.constant 0 : index
      %56 = vector.load %arg16[%c0_45, %c0_46] : memref<4x256xf32, #tpu.memory_space<vmem>>, vector<4x256xf32>
      tpu.vector_store %arg16[%c0_45, %c0_46], %55 {strides = array<i32>} : memref<4x256xf32, #tpu.memory_space<vmem>>, vector<4x256xf32>,
    } else {
    }
    %c128_i32 = arith.constant 128 : i32
    %3 = arith.muli %arg1, %c128_i32 : i32
    %4 = tpu.assume_multiple %3, 128 : i32
    %c0 = arith.constant 0 : index
    %c0_1 = arith.constant 0 : index
    %c0_2 = arith.constant 0 : index
    %5 = vector.load %arg2[%c0, %c0_1, %c0_2] : memref<1x128x4xf32, #tpu.memory_space<vmem>>, vector<1x128x4xf32>
    %6 = vector.shape_cast %5 : vector<1x128x4xf32> to vector<128x4xf32>
    %c0_3 = arith.constant 0 : index
    %c0_4 = arith.constant 0 : index
    %7 = vector.load %arg4[%c0_3, %c0_4] : memref<4x8xf32, #tpu.memory_space<vmem>>, vector<4x8xf32>
    %cst = arith.constant dense<0.000000e+00> : vector<128x8xf32>
    %8 = tpu.matmul %6, %7, %cst {dimension_numbers = #tpu.dot_dimension_numbers<[1], [0], [0], [1], [0, 0, 1, 1], [], []>} : vector<128x4xf32>, vector<4x8xf32>, vector<128x8xf32> -> vector<128x8xf32>
    %c0_5 = arith.constant 0 : index
    %c0_6 = arith.constant 0 : index
    %9 = vector.load %arg5[%c0_5, %c0_6] : memref<1x8xf32, #tpu.memory_space<vmem>>, vector<1x8xf32>
    %10 = vector.broadcast %9 : vector<1x8xf32> to vector<128x8xf32>
    %11 = arith.addf %8, %10 : vector<128x8xf32>
    %c0_7 = arith.constant 0 : index
    %c0_8 = arith.constant 0 : index
    %12 = vector.load %arg15[%c0_7, %c0_8] : memref<8x256xf32, #tpu.memory_space<vmem>>, vector<8x256xf32>
    %cst_9 = arith.constant dense<0.000000e+00> : vector<128x256xf32>
    %13 = tpu.matmul %11, %12, %cst_9 {dimension_numbers = #tpu.dot_dimension_numbers<[1], [0], [0], [1], [0, 0, 1, 1], [], []>} : vector<128x8xf32>, vector<8x256xf32>, vector<128x256xf32> -> vector<128x256xf32>
    %cst_10 = arith.constant dense<0xFF800000> : vector<128xf32>
    %14 = vector.multi_reduction <maximumf>, %13, %cst_10 [1] : vector<128x256xf32> to vector<128xf32>
    %15 = vector.shape_cast %14 : vector<128xf32> to vector<128x1xf32>
    %16 = vector.broadcast %15 : vector<128x1xf32> to vector<128x256xf32>
    %17 = arith.subf %13, %16 : vector<128x256xf32>
    %18 = math.exp %17 : vector<128x256xf32>
    %cst_11 = arith.constant dense<0.000000e+00> : vector<128xf32>
    %19 = vector.multi_reduction <add>, %18, %cst_11 [1] : vector<128x256xf32> to vector<128xf32>
    %20 = vector.shape_cast %19 : vector<128xf32> to vector<128x1xf32>
    %21 = vector.broadcast %20 : vector<128x1xf32> to vector<128x256xf32>
    %22 = arith.divf %18, %21 : vector<128x256xf32>
    %c0_12 = arith.constant 0 : index
    %c0_13 = arith.constant 0 : index
    %c0_14 = arith.constant 0 : index
    %23 = vector.load %arg14[%c0_12, %c0_13, %c0_14] : memref<1x128x256xf32, #tpu.memory_space<vmem>>, vector<1x128x256xf32>
    %24 = vector.shape_cast %23 : vector<1x128x256xf32> to vector<128x256xf32>
    %25 = vector.shape_cast %22 : vector<128x256xf32> to vector<1x128x256xf32>
    tpu.vector_store %arg14[%c0_12, %c0_13, %c0_14], %25 {strides = array<i32>} : memref<1x128x256xf32, #tpu.memory_space<vmem>>, vector<1x128x256xf32>,
    %c0_15 = arith.constant 0 : index
    %c0_16 = arith.constant 0 : index
    %26 = vector.load %arg16[%c0_15, %c0_16] : memref<4x256xf32, #tpu.memory_space<vmem>>, vector<4x256xf32>
    %cst_17 = arith.constant dense<0.000000e+00> : vector<4x128xf32>
    %27 = tpu.matmul %26, %22, %cst_17 {dimension_numbers = #tpu.dot_dimension_numbers<[1], [1], [0], [0], [0, 0, 1, 0], [], []>} : vector<4x256xf32>, vector<128x256xf32>, vector<4x128xf32> -> vector<4x128xf32>
    %c0_18 = arith.constant 0 : index
    %c0_19 = arith.constant 0 : index
    %28 = vector.load %arg11[%c0_18, %c0_19] : memref<4x1xf32, #tpu.memory_space<vmem>>, vector<4x1xf32>
    %29 = vector.broadcast %28 : vector<4x1xf32> to vector<4x128xf32>
    %30 = arith.addf %27, %29 : vector<4x128xf32>
    %c0_20 = arith.constant 0 : index
    %c0_21 = arith.constant 0 : index
    %31 = memref.load %arg12[%c0_20, %c0_21] : memref<1x1xf32, #tpu.memory_space<smem>>
    %c0_22 = arith.constant 0 : index
    %c0_23 = arith.constant 0 : index
    %32 = arith.index_cast %4 : i32 to index
    %33 = vector.load %arg3[%c0_22, %c0_23, %32] : memref<1x4x256xf32, #tpu.memory_space<vmem>>, vector<1x4x128xf32>
    %34 = vector.shape_cast %33 : vector<1x4x128xf32> to vector<4x128xf32>
    %35 = vector.broadcast %31 : f32 to vector<4x128xf32>
    %36 = arith.mulf %35, %30 : vector<4x128xf32>
    %37 = arith.addf %36, %34 : vector<4x128xf32>
    %c0_24 = arith.constant 0 : index
    %c0_25 = arith.constant 0 : index
    %c0_26 = arith.constant 0 : index
    %38 = vector.load %arg13[%c0_24, %c0_25, %c0_26] : memref<1x4x128xf32, #tpu.memory_space<vmem>>, vector<1x4x128xf32>
    %39 = vector.shape_cast %38 : vector<1x4x128xf32> to vector<4x128xf32>
    %40 = vector.shape_cast %37 : vector<4x128xf32> to vector<1x4x128xf32>
    tpu.vector_store %arg13[%c0_24, %c0_25, %c0_26], %40 {strides = array<i32>} : memref<1x4x128xf32, #tpu.memory_space<vmem>>, vector<1x4x128xf32>,
    return
  }
  func.func @transform_0(%arg0: i32, %arg1: i32) -> (i32, i32, i32) {
    %c0_i32 = arith.constant 0 : i32
    %c0_i32_0 = arith.constant 0 : i32
    return %arg0, %arg1, %c0_i32 : i32, i32, i32
  }
  func.func @transform_1(%arg0: i32, %arg1: i32) -> (i32, i32, i32) {
    %c0_i32 = arith.constant 0 : i32
    %c0_i32_0 = arith.constant 0 : i32
    %c0_i32_1 = arith.constant 0 : i32
    return %arg0, %c0_i32, %c0_i32_0 : i32, i32, i32
  }
  func.func @transform_2(%arg0: i32, %arg1: i32) -> (i32, i32) {
    %c0_i32 = arith.constant 0 : i32
    %c0_i32_0 = arith.constant 0 : i32
    %c0_i32_1 = arith.constant 0 : i32
    return %c0_i32, %c0_i32_0 : i32, i32
  }
  func.func @transform_3(%arg0: i32, %arg1: i32) -> (i32, i32) {
    %c0_i32 = arith.constant 0 : i32
    %c0_i32_0 = arith.constant 0 : i32
    %c0_i32_1 = arith.constant 0 : i32
    return %c0_i32, %c0_i32_0 : i32, i32
  }
  func.func @transform_4(%arg0: i32, %arg1: i32) -> (i32, i32) {
    %c0_i32 = arith.constant 0 : i32
    %c0_i32_0 = arith.constant 0 : i32
    %c0_i32_1 = arith.constant 0 : i32
    return %c0_i32, %c0_i32_0 : i32, i32
  }
  func.func @transform_5(%arg0: i32, %arg1: i32) -> (i32, i32) {
    %c0_i32 = arith.constant 0 : i32
    %c0_i32_0 = arith.constant 0 : i32
    %c0_i32_1 = arith.constant 0 : i32
    return %c0_i32, %c0_i32_0 : i32, i32
  }
  func.func @transform_6(%arg0: i32, %arg1: i32) -> (i32, i32) {
    %c0_i32 = arith.constant 0 : i32
    %c0_i32_0 = arith.constant 0 : i32
    %c0_i32_1 = arith.constant 0 : i32
    return %c0_i32, %c0_i32_0 : i32, i32
  }
  func.func @transform_7(%arg0: i32, %arg1: i32) -> (i32, i32) {
    %c0_i32 = arith.constant 0 : i32
    %c0_i32_0 = arith.constant 0 : i32
    %c0_i32_1 = arith.constant 0 : i32
    return %c0_i32, %c0_i32_0 : i32, i32
  }
  func.func @transform_8(%arg0: i32, %arg1: i32) -> (i32, i32) {
    %c0_i32 = arith.constant 0 : i32
    %c0_i32_0 = arith.constant 0 : i32
    %c0_i32_1 = arith.constant 0 : i32
    return %c0_i32, %c0_i32_0 : i32, i32
  }
  func.func @transform_9(%arg0: i32, %arg1: i32) -> (i32, i32) {
    %c0_i32 = arith.constant 0 : i32
    %c0_i32_0 = arith.constant 0 : i32
    %c0_i32_1 = arith.constant 0 : i32
    return %c0_i32, %c0_i32_0 : i32, i32
  }
  func.func @transform_10(%arg0: i32, %arg1: i32) -> (i32, i32) {
    %c0_i32 = arith.constant 0 : i32
    %c0_i32_0 = arith.constant 0 : i32
    %c0_i32_1 = arith.constant 0 : i32
    return %c0_i32, %c0_i32_0 : i32, i32
  }
  func.func @transform_11(%arg0: i32, %arg1: i32) -> (i32, i32, i32) {
    %c0_i32 = arith.constant 0 : i32
    %c0_i32_0 = arith.constant 0 : i32
    return %arg0, %c0_i32, %arg1 : i32, i32, i32
  }
  func.func @transform_12(%arg0: i32, %arg1: i32) -> (i32, i32, i32) {
    %c0_i32 = arith.constant 0 : i32
    %c0_i32_0 = arith.constant 0 : i32
    return %arg0, %arg1, %c0_i32 : i32, i32, i32
  }
}

</mosaic_0001>

<llo_original>
// kernel: tpu_custom_call.1
$region0: #{tpu_custom_call.1}
  #allocation0 [shape = 'u32[]', space=smem, size = 0x4, offset = 0x4, fixed_abs, tag = 'smem constant byte address 0x4 - core index']
  #allocation1 [shape = 'u32[144,128]{1,0:T(1,128)}', space=vmem, size = 0x12000, scoped, tag = 'internal scratch']
  #allocation2 [shape = 'f32[8,256]{1,0:T(8,128)}', space=vmem, size = 0x2000, scoped, tag = 'scratch operand']
  #allocation3 [shape = 'f32[4,256]{1,0:T(4,128)}', space=vmem, size = 0x1000, scoped, tag = 'scratch operand']
  #allocation4 [shape = 'f32[1,1]{1,0:T(1,128)S(6)}', space=smem, size = 0x200, scoped, tag = 'scoped memory for tpu_custom_call.1']
  %s0 = inlined_call_operand.vmem [shape: f32[2,256,4], index: 0, kind: input, shape index: {}]
  %s1 = inlined_call_operand.vmem [shape: f32[2,4,256], index: 1, kind: input, shape index: {}]
  %s2 = inlined_call_operand.vmem [shape: f32[4,8], index: 2, kind: input, shape index: {}]
  %s3 = inlined_call_operand.vmem [shape: f32[1,8], index: 3, kind: input, shape index: {}]
  %s4 = inlined_call_operand.vmem [shape: f32[8,4], index: 4, kind: input, shape index: {}]
  %s5 = inlined_call_operand.vmem [shape: f32[8,1], index: 5, kind: input, shape index: {}]
  %s6 = inlined_call_operand.vmem [shape: f32[8,4], index: 6, kind: input, shape index: {}]
  %s7 = inlined_call_operand.vmem [shape: f32[8,1], index: 7, kind: input, shape index: {}]
  %s8 = inlined_call_operand.vmem [shape: f32[4,8], index: 8, kind: input, shape index: {}]
  %s9 = inlined_call_operand.vmem [shape: f32[4,1], index: 9, kind: input, shape index: {}]
  %s10 = inlined_call_operand.<no memory space> [shape: f32[1,1], index: 10, kind: input, shape index: {}]
  %s11 = inlined_call_operand.hbm [shape: f32[2,4,256], index: 11, kind: output, shape index: {0}]
  %s12 = inlined_call_operand.hbm [shape: f32[2,256,256], index: 12, kind: output, shape index: {1}]
  %13 = xla_tuple %s11, %s12
  %s14 = sld [smem:[#allocation0]]
  $region89: #{tpu_custom_call.1} parent=0
    _
  %s16 = ssub.s32 1, %s14
  %s17 = scalar_select 0, %s16, %s14
  %18 = sst [smem:[#allocation4]] %s10
  $region1: #{tpu_custom_call.1} parent=0
    #allocation5 [shape = 'u8[4096]{0}', space=vmem, size = 0x1000, scoped, tag = 'output window, operand 0']
    #allocation6 [shape = 's32[2]{0}', space=sflag, size = 0x8, scoped, tag = 'scoped memory for tpu_custom_call.1']
    #allocation7 [shape = 'u8[262144]{0}', space=vmem, size = 0x40000, scoped, tag = 'output window, operand 1']
    #allocation8 [shape = 's32[2]{0}', space=sflag, size = 0x8, scoped, tag = 'scoped memory for tpu_custom_call.1']
    %19 = vsyncpa [#allocation6], 0
    %s20 = scalar_lea.sflag [#allocation6], 1
    %21 = vsyncpa %s20, 0
    %22 = vsyncpa [#allocation8], 0
    %s23 = scalar_lea.sflag [#allocation8], 1
    %24 = vsyncpa %s23, 0
    loop: start=0, step=1, limit=6
    $region2: #{tpu_custom_call.1} parent=1 // loop_pre_header
      _
    $region3: #{tpu_custom_call.1} parent=1 // loop_header
      %s26 = sphi 0, %s30
      %p27 = scmp.ge.s32.totalorder %s26, 6
      %s33 = sphi 0, %s45
      %s34 = sphi 0, %s41
      %s35 = sphi 0, %s33
      %s36 = sphi 0, %s34
      %s37 = sphi 0, %s35
      %s38 = sphi 0, %s36
      %s50 = sphi 0, %s52
      %s53 = sphi 0, %s50
      %s54 = sphi 0, %s53
      %s70 = sphi 0, %s54
      %s76 = sphi 0, %s78
      %s79 = sphi 0, %s76
      %s80 = sphi 0, %s79
      %s96 = sphi 0, %s80
      %s100 = sphi 0, %s100
      %s102 = sphi 0, %s100
      %s103 = sphi 0, %s102
      %s117 = sphi 0, %s103
      %s121 = sphi 0, %s121
      %s123 = sphi 0, %s121
      %s124 = sphi 0, %s123
      %s138 = sphi 0, %s124
      %s142 = sphi 0, %s142
      %s144 = sphi 0, %s142
      %s145 = sphi 0, %s144
      %s159 = sphi 0, %s145
      %s163 = sphi 0, %s163
      %s165 = sphi 0, %s163
      %s166 = sphi 0, %s165
      %s180 = sphi 0, %s166
      %s184 = sphi 0, %s184
      %s186 = sphi 0, %s184
      %s187 = sphi 0, %s186
      %s201 = sphi 0, %s187
      %s205 = sphi 0, %s205
      %s207 = sphi 0, %s205
      %s208 = sphi 0, %s207
      %s222 = sphi 0, %s208
      %s226 = sphi 0, %s226
      %s228 = sphi 0, %s226
      %s229 = sphi 0, %s228
      %s243 = sphi 0, %s229
      %s247 = sphi 0, %s247
      %s249 = sphi 0, %s247
      %s250 = sphi 0, %s249
      %s264 = sphi 0, %s250
      %s268 = sphi 0, %s268
      %s270 = sphi 0, %s268
      %s271 = sphi 0, %s270
      %s285 = sphi 0, %s271
      %s293 = sphi 0, %s295
      %s296 = sphi 0, %s293
      %s297 = sphi 0, %s296
      %s313 = sphi 0, %s297
      %s321 = sphi 0, %s323
      %s324 = sphi 0, %s321
      %s325 = sphi 0, %s324
      %s341 = sphi 0, %s325
    $region4: #{tpu_custom_call.1} parent=1 // loop_header_branch
      %29 = sbr.rel (%p27) target = $region8
    $region5: #{tpu_custom_call.1} parent=1 // loop_body
      %s31 = ssub.s32 %s26, 1
      %s32 = ssub.s32 %s26, 2
      %s39 = sadd.s32 1, %s34
      %p40 = scmp.ge.s32.totalorder %s39, 2
      %s41 = scalar_select %p40, 0, %s39
      %s42 = sadd.s32 1, %s33
      %s43 = scalar_select %p40, %s42, %s33
      %p44 = scmp.ge.s32.totalorder %s43, 2
      %s45 = scalar_select %p44, 0, %s43
      %s46 = ssub.s32 %s33, %s45
      %s47 = ssub.s32 %s34, %s41
      %s48 = sor.u32 %s46, %s47
      %p49 = scmp.eq.s32.totalorder %s48, 0
      %s51 = sadd.s32 %s50, 1
      %s52 = scalar_select %p49, %s50, %s51
      %p55 = pneg %p49
      %p56 = scmp.eq.s32.totalorder %s26, 3
      %p57 = por %p55, %p56
      %p58 = scmp.ne.s32.totalorder %s50, %s53
      %p59 = scmp.eq.s32.totalorder %s26, 0
      %p60 = por %p58, %p59
      %p61 = scmp.ne.s32.totalorder %s50, %s53
      %p62 = scmp.eq.s32.totalorder %s31, 3
      %p63 = por %p61, %p62
      %p64 = scmp.ne.s32.totalorder %s53, %s54
      %p65 = scmp.eq.s32.totalorder %s31, 0
      %p66 = por %p64, %p65
      %p67 = scmp.ne.s32.totalorder %s53, %s54
      %p68 = scmp.eq.s32.totalorder %s32, 3
      %p69 = por %p67, %p68
      %p71 = scmp.ne.s32.totalorder %s54, %s70
      %p72 = scmp.eq.s32.totalorder %s32, 0
      %p73 = por %p71, %p72
      %s74 = ssub.s32 %s33, %s45
      %p75 = scmp.eq.s32.totalorder %s74, 0
      %s77 = sadd.s32 %s76, 1
      %s78 = scalar_select %p75, %s76, %s77
      %p81 = pneg %p75
      %p82 = scmp.eq.s32.totalorder %s26, 3
      %p83 = por %p81, %p82
      %p84 = scmp.ne.s32.totalorder %s76, %s79
      %p85 = scmp.eq.s32.totalorder %s26, 0
      %p86 = por %p84, %p85
      %p87 = scmp.ne.s32.totalorder %s76, %s79
      %p88 = scmp.eq.s32.totalorder %s31, 3
      %p89 = por %p87, %p88
      %p90 = scmp.ne.s32.totalorder %s79, %s80
      %p91 = scmp.eq.s32.totalorder %s31, 0
      %p92 = por %p90, %p91
      %p93 = scmp.ne.s32.totalorder %s79, %s80
      %p94 = scmp.eq.s32.totalorder %s32, 3
      %p95 = por %p93, %p94
      %p97 = scmp.ne.s32.totalorder %s80, %s96
      %p98 = scmp.eq.s32.totalorder %s32, 0
      %p99 = por %p97, %p98
      %s101 = sadd.s32 %s100, 1
      %p104 = scmp.eq.s32.totalorder %s26, 3
      %p105 = scmp.ne.s32.totalorder %s100, %s102
      %p106 = scmp.eq.s32.totalorder %s26, 0
      %p107 = por %p105, %p106
      %p108 = scmp.ne.s32.totalorder %s100, %s102
      %p109 = scmp.eq.s32.totalorder %s31, 3
      %p110 = por %p108, %p109
      %p111 = scmp.ne.s32.totalorder %s102, %s103
      %p112 = scmp.eq.s32.totalorder %s31, 0
      %p113 = por %p111, %p112
      %p114 = scmp.ne.s32.totalorder %s102, %s103
      %p115 = scmp.eq.s32.totalorder %s32, 3
      %p116 = por %p114, %p115
      %p118 = scmp.ne.s32.totalorder %s103, %s117
      %p119 = scmp.eq.s32.totalorder %s32, 0
      %p120 = por %p118, %p119
      %s122 = sadd.s32 %s121, 1
      %p125 = scmp.eq.s32.totalorder %s26, 3
      %p126 = scmp.ne.s32.totalorder %s121, %s123
      %p127 = scmp.eq.s32.totalorder %s26, 0
      %p128 = por %p126, %p127
      %p129 = scmp.ne.s32.totalorder %s121, %s123
      %p130 = scmp.eq.s32.totalorder %s31, 3
      %p131 = por %p129, %p130
      %p132 = scmp.ne.s32.totalorder %s123, %s124
      %p133 = scmp.eq.s32.totalorder %s31, 0
      %p134 = por %p132, %p133
      %p135 = scmp.ne.s32.totalorder %s123, %s124
      %p136 = scmp.eq.s32.totalorder %s32, 3
      %p137 = por %p135, %p136
      %p139 = scmp.ne.s32.totalorder %s124, %s138
      %p140 = scmp.eq.s32.totalorder %s32, 0
      %p141 = por %p139, %p140
      %s143 = sadd.s32 %s142, 1
      %p146 = scmp.eq.s32.totalorder %s26, 3
      %p147 = scmp.ne.s32.totalorder %s142, %s144
      %p148 = scmp.eq.s32.totalorder %s26, 0
      %p149 = por %p147, %p148
      %p150 = scmp.ne.s32.totalorder %s142, %s144
      %p151 = scmp.eq.s32.totalorder %s31, 3
      %p152 = por %p150, %p151
      %p153 = scmp.ne.s32.totalorder %s144, %s145
      %p154 = scmp.eq.s32.totalorder %s31, 0
      %p155 = por %p153, %p154
      %p156 = scmp.ne.s32.totalorder %s144, %s145
      %p157 = scmp.eq.s32.totalorder %s32, 3
      %p158 = por %p156, %p157
      %p160 = scmp.ne.s32.totalorder %s145, %s159
      %p161 = scmp.eq.s32.totalorder %s32, 0
      %p162 = por %p160, %p161
      %s164 = sadd.s32 %s163, 1
      %p167 = scmp.eq.s32.totalorder %s26, 3
      %p168 = scmp.ne.s32.totalorder %s163, %s165
      %p169 = scmp.eq.s32.totalorder %s26, 0
      %p170 = por %p168, %p169
      %p171 = scmp.ne.s32.totalorder %s163, %s165
      %p172 = scmp.eq.s32.totalorder %s31, 3
      %p173 = por %p171, %p172
      %p174 = scmp.ne.s32.totalorder %s165, %s166
      %p175 = scmp.eq.s32.totalorder %s31, 0
      %p176 = por %p174, %p175
      %p177 = scmp.ne.s32.totalorder %s165, %s166
      %p178 = scmp.eq.s32.totalorder %s32, 3
      %p179 = por %p177, %p178
      %p181 = scmp.ne.s32.totalorder %s166, %s180
      %p182 = scmp.eq.s32.totalorder %s32, 0
      %p183 = por %p181, %p182
      %s185 = sadd.s32 %s184, 1
      %p188 = scmp.eq.s32.totalorder %s26, 3
      %p189 = scmp.ne.s32.totalorder %s184, %s186
      %p190 = scmp.eq.s32.totalorder %s26, 0
      %p191 = por %p189, %p190
      %p192 = scmp.ne.s32.totalorder %s184, %s186
      %p193 = scmp.eq.s32.totalorder %s31, 3
      %p194 = por %p192, %p193
      %p195 = scmp.ne.s32.totalorder %s186, %s187
      %p196 = scmp.eq.s32.totalorder %s31, 0
      %p197 = por %p195, %p196
      %p198 = scmp.ne.s32.totalorder %s186, %s187
      %p199 = scmp.eq.s32.totalorder %s32, 3
      %p200 = por %p198, %p199
      %p202 = scmp.ne.s32.totalorder %s187, %s201
      %p203 = scmp.eq.s32.totalorder %s32, 0
      %p204 = por %p202, %p203
      %s206 = sadd.s32 %s205, 1
      %p209 = scmp.eq.s32.totalorder %s26, 3
      %p210 = scmp.ne.s32.totalorder %s205, %s207
      %p211 = scmp.eq.s32.totalorder %s26, 0
      %p212 = por %p210, %p211
      %p213 = scmp.ne.s32.totalorder %s205, %s207
      %p214 = scmp.eq.s32.totalorder %s31, 3
      %p215 = por %p213, %p214
      %p216 = scmp.ne.s32.totalorder %s207, %s208
      %p217 = scmp.eq.s32.totalorder %s31, 0
      %p218 = por %p216, %p217
      %p219 = scmp.ne.s32.totalorder %s207, %s208
      %p220 = scmp.eq.s32.totalorder %s32, 3
      %p221 = por %p219, %p220
      %p223 = scmp.ne.s32.totalorder %s208, %s222
      %p224 = scmp.eq.s32.totalorder %s32, 0
      %p225 = por %p223, %p224
      %s227 = sadd.s32 %s226, 1
      %p230 = scmp.eq.s32.totalorder %s26, 3
      %p231 = scmp.ne.s32.totalorder %s226, %s228
      %p232 = scmp.eq.s32.totalorder %s26, 0
      %p233 = por %p231, %p232
      %p234 = scmp.ne.s32.totalorder %s226, %s228
      %p235 = scmp.eq.s32.totalorder %s31, 3
      %p236 = por %p234, %p235
      %p237 = scmp.ne.s32.totalorder %s228, %s229
      %p238 = scmp.eq.s32.totalorder %s31, 0
      %p239 = por %p237, %p238
      %p240 = scmp.ne.s32.totalorder %s228, %s229
      %p241 = scmp.eq.s32.totalorder %s32, 3
      %p242 = por %p240, %p241
      %p244 = scmp.ne.s32.totalorder %s229, %s243
      %p245 = scmp.eq.s32.totalorder %s32, 0
      %p246 = por %p244, %p245
      %s248 = sadd.s32 %s247, 1
      %p251 = scmp.eq.s32.totalorder %s26, 3
      %p252 = scmp.ne.s32.totalorder %s247, %s249
      %p253 = scmp.eq.s32.totalorder %s26, 0
      %p254 = por %p252, %p253
      %p255 = scmp.ne.s32.totalorder %s247, %s249
      %p256 = scmp.eq.s32.totalorder %s31, 3
      %p257 = por %p255, %p256
      %p258 = scmp.ne.s32.totalorder %s249, %s250
      %p259 = scmp.eq.s32.totalorder %s31, 0
      %p260 = por %p258, %p259
      %p261 = scmp.ne.s32.totalorder %s249, %s250
      %p262 = scmp.eq.s32.totalorder %s32, 3
      %p263 = por %p261, %p262
      %p265 = scmp.ne.s32.totalorder %s250, %s264
      %p266 = scmp.eq.s32.totalorder %s32, 0
      %p267 = por %p265, %p266
      %s269 = sadd.s32 %s268, 1
      %p272 = scmp.eq.s32.totalorder %s26, 3
      %p273 = scmp.ne.s32.totalorder %s268, %s270
      %p274 = scmp.eq.s32.totalorder %s26, 0
      %p275 = por %p273, %p274
      %p276 = scmp.ne.s32.totalorder %s268, %s270
      %p277 = scmp.eq.s32.totalorder %s31, 3
      %p278 = por %p276, %p277
      %p279 = scmp.ne.s32.totalorder %s270, %s271
      %p280 = scmp.eq.s32.totalorder %s31, 0
      %p281 = por %p279, %p280
      %p282 = scmp.ne.s32.totalorder %s270, %s271
      %p283 = scmp.eq.s32.totalorder %s32, 3
      %p284 = por %p282, %p283
      %p286 = scmp.ne.s32.totalorder %s271, %s285
      %p287 = scmp.eq.s32.totalorder %s32, 0
      %p288 = por %p286, %p287
      %s289 = ssub.s32 %s33, %s45
      %s290 = ssub.s32 %s34, %s41
      %s291 = sor.u32 %s289, %s290
      %p292 = scmp.eq.s32.totalorder %s291, 0
      %s294 = sadd.s32 %s293, 1
      %s295 = scalar_select %p292, %s293, %s294
      %p298 = pneg %p292
      %p299 = scmp.eq.s32.totalorder %s26, 3
      %p300 = por %p298, %p299
      %p301 = scmp.ne.s32.totalorder %s293, %s296
      %p302 = scmp.eq.s32.totalorder %s26, 0
      %p303 = por %p301, %p302
      %p304 = scmp.ne.s32.totalorder %s293, %s296
      %p305 = scmp.eq.s32.totalorder %s31, 3
      %p306 = por %p304, %p305
      %p307 = scmp.ne.s32.totalorder %s296, %s297
      %p308 = scmp.eq.s32.totalorder %s31, 0
      %p309 = por %p307, %p308
      %p310 = scmp.ne.s32.totalorder %s296, %s297
      %p311 = scmp.eq.s32.totalorder %s32, 3
      %p312 = por %p310, %p311
      %p314 = scmp.ne.s32.totalorder %s297, %s313
      %p315 = scmp.eq.s32.totalorder %s32, 0
      %p316 = por %p314, %p315
      %s317 = ssub.s32 %s33, %s45
      %s318 = ssub.s32 %s34, %s41
      %s319 = sor.u32 %s317, %s318
      %p320 = scmp.eq.s32.totalorder %s319, 0
      %s322 = sadd.s32 %s321, 1
      %s323 = scalar_select %p320, %s321, %s322
      %p326 = pneg %p320
      %p327 = scmp.eq.s32.totalorder %s26, 3
      %p328 = por %p326, %p327
      %p329 = scmp.ne.s32.totalorder %s321, %s324
      %p330 = scmp.eq.s32.totalorder %s26, 0
      %p331 = por %p329, %p330
      %p332 = scmp.ne.s32.totalorder %s321, %s324
      %p333 = scmp.eq.s32.totalorder %s31, 3
      %p334 = por %p332, %p333
      %p335 = scmp.ne.s32.totalorder %s324, %s325
      %p336 = scmp.eq.s32.totalorder %s31, 0
      %p337 = por %p335, %p336
      %p338 = scmp.ne.s32.totalorder %s324, %s325
      %p339 = scmp.eq.s32.totalorder %s32, 3
      %p340 = por %p338, %p339
      %p342 = scmp.ne.s32.totalorder %s325, %s341
      %p343 = scmp.eq.s32.totalorder %s32, 0
      %p344 = por %p342, %p343
      %p345 = scmp.le.s32.totalorder 1, %s26
      %p346 = scmp.lt.s32.totalorder %s26, 5
      %p347 = pnand %p345, %p346
      %p348 = pneg %p347
      // Predicated region
      $region9: #{tpu_custom_call.1} parent=5 // pred_check
        _
      $region10: #{tpu_custom_call.1} parent=5 // pred_check_branch
        %350 = sbr.rel (%p347) target = $region12
      $region11: #{tpu_custom_call.1} parent=5 // pred_region
        %s351 = ssub.s32 %s26, 1
        // Predicated region
        $region13: #{tpu_custom_call.1} parent=11 // pred_check
          %p352 = pneg %p113
        $region14: #{tpu_custom_call.1} parent=11 // pred_check_branch
          %354 = sbr.rel (%p352) target = $region16
        $region15: #{tpu_custom_call.1} parent=11 // pred_region
          _
        $region16: #{tpu_custom_call.1} parent=11 // pred_fallthru
          _
        // Predicated region
        $region17: #{tpu_custom_call.1} parent=11 // pred_check
          %p355 = pneg %p134
        $region18: #{tpu_custom_call.1} parent=11 // pred_check_branch
          %357 = sbr.rel (%p355) target = $region20
        $region19: #{tpu_custom_call.1} parent=11 // pred_region
          _
        $region20: #{tpu_custom_call.1} parent=11 // pred_fallthru
          _
        // Predicated region
        $region21: #{tpu_custom_call.1} parent=11 // pred_check
          %p358 = pneg %p155
        $region22: #{tpu_custom_call.1} parent=11 // pred_check_branch
          %360 = sbr.rel (%p358) target = $region24
        $region23: #{tpu_custom_call.1} parent=11 // pred_region
          _
        $region24: #{tpu_custom_call.1} parent=11 // pred_fallthru
          _
        // Predicated region
        $region25: #{tpu_custom_call.1} parent=11 // pred_check
          %p361 = pneg %p176
        $region26: #{tpu_custom_call.1} parent=11 // pred_check_branch
          %363 = sbr.rel (%p361) target = $region28
        $region27: #{tpu_custom_call.1} parent=11 // pred_region
          _
        $region28: #{tpu_custom_call.1} parent=11 // pred_fallthru
          _
        // Predicated region
        $region29: #{tpu_custom_call.1} parent=11 // pred_check
          %p364 = pneg %p197
        $region30: #{tpu_custom_call.1} parent=11 // pred_check_branch
          %366 = sbr.rel (%p364) target = $region32
        $region31: #{tpu_custom_call.1} parent=11 // pred_region
          _
        $region32: #{tpu_custom_call.1} parent=11 // pred_fallthru
          _
        // Predicated region
        $region33: #{tpu_custom_call.1} parent=11 // pred_check
          %p367 = pneg %p218
        $region34: #{tpu_custom_call.1} parent=11 // pred_check_branch
          %369 = sbr.rel (%p367) target = $region36
        $region35: #{tpu_custom_call.1} parent=11 // pred_region
          _
        $region36: #{tpu_custom_call.1} parent=11 // pred_fallthru
          _
        // Predicated region
        $region37: #{tpu_custom_call.1} parent=11 // pred_check
          %p370 = pneg %p239
        $region38: #{tpu_custom_call.1} parent=11 // pred_check_branch
          %372 = sbr.rel (%p370) target = $region40
        $region39: #{tpu_custom_call.1} parent=11 // pred_region
          _
        $region40: #{tpu_custom_call.1} parent=11 // pred_fallthru
          _
        // Predicated region
        $region41: #{tpu_custom_call.1} parent=11 // pred_check
          %p373 = pneg %p260
        $region42: #{tpu_custom_call.1} parent=11 // pred_check_branch
          %375 = sbr.rel (%p373) target = $region44
        $region43: #{tpu_custom_call.1} parent=11 // pred_region
          _
        $region44: #{tpu_custom_call.1} parent=11 // pred_fallthru
          _
        // Predicated region
        $region45: #{tpu_custom_call.1} parent=11 // pred_check
          %p376 = pneg %p281
        $region46: #{tpu_custom_call.1} parent=11 // pred_check_branch
          %378 = sbr.rel (%p376) target = $region48
        $region47: #{tpu_custom_call.1} parent=11 // pred_region
          _
        $region48: #{tpu_custom_call.1} parent=11 // pred_fallthru
          _
      $region12: #{tpu_custom_call.1} parent=5 // pred_fallthru
        _
      %p379 = scmp.lt.s32.totalorder %s26, 4
      // Predicated region
      $region49: #{tpu_custom_call.1} parent=5 // pred_check
        %p380 = pneg %p379
      $region50: #{tpu_custom_call.1} parent=5 // pred_check_branch
        %382 = sbr.rel (%p380) target = $region52
      $region51: #{tpu_custom_call.1} parent=5 // pred_region
        // Predicated region
        $region53: #{tpu_custom_call.1} parent=51 // pred_check
          %p383 = pneg %p60
        $region54: #{tpu_custom_call.1} parent=51 // pred_check_branch
          %385 = sbr.rel (%p383) target = $region56
        $region55: #{tpu_custom_call.1} parent=51 // pred_region
          %s386 = smul.u32 16, %s34
          %p387 = scmp.lt.s32.totalorder %s33, 1
          %s388 = scalar_select %p387, %s33, 1
          %p389 = scmp.lt.s32.totalorder %s386, 31
          %s390 = scalar_select %p389, %s386, 31
          %s391 = smul.addr %s388, 32
          %s392 = sadd.s32 %s390, %s391
          %s393 = smul.addr %s392, 8
          %s394 = scalar_lea.vmem %s0, %s393
          %s395 = smul.u32 16, %s34
        $region56: #{tpu_custom_call.1} parent=51 // pred_fallthru
          _
        // Predicated region
        $region57: #{tpu_custom_call.1} parent=51 // pred_check
          %p396 = pneg %p86
        $region58: #{tpu_custom_call.1} parent=51 // pred_check_branch
          %398 = sbr.rel (%p396) target = $region60
        $region59: #{tpu_custom_call.1} parent=51 // pred_region
          %p399 = scmp.lt.s32.totalorder %s33, 1
          %s400 = scalar_select %p399, %s33, 1
          %s401 = smul.addr %s400, 2
          %s402 = smul.addr %s401, 4
          %s403 = scalar_lea.vmem %s1, %s402
        $region60: #{tpu_custom_call.1} parent=51 // pred_fallthru
          _
      $region52: #{tpu_custom_call.1} parent=5 // pred_fallthru
        _
      %p404 = scmp.le.s32.totalorder 1, %s26
      %p405 = scmp.lt.s32.totalorder %s26, 5
      %p406 = pnand %p404, %p405
      %p407 = pneg %p406
      // Predicated region
      $region61: #{tpu_custom_call.1} parent=5 // pred_check
        _
      $region62: #{tpu_custom_call.1} parent=5 // pred_check_branch
        %409 = sbr.rel (%p406) target = $region64
      $region63: #{tpu_custom_call.1} parent=5 // pred_region
        %s410 = ssub.s32 %s26, 1
        %s411 = smul.u32 16, %s36
        %p412 = scmp.lt.s32.totalorder %s35, 1
        %s413 = scalar_select %p412, %s35, 1
        %p414 = scmp.lt.s32.totalorder %s411, 31
        %s415 = scalar_select %p414, %s411, 31
        %s416 = smul.addr %s413, 32
        %s417 = sadd.s32 %s415, %s416
        %s418 = smul.addr %s417, 8
        %s419 = scalar_lea.vmem %s0, %s418
        %p420 = pneg %p66
        %p421 = pneg %p63
        %p422 = scmp.lt.s32.totalorder %s35, 1
        %s423 = scalar_select %p422, %s35, 1
        %s424 = smul.addr %s423, 2
        %s425 = smul.addr %s424, 4
        %s426 = scalar_lea.vmem %s1, %s425
        %p427 = pneg %p92
        %p428 = pneg %p89
        %p429 = pneg %p113
        %p430 = pneg %p110
        %p431 = pneg %p134
        %p432 = pneg %p131
        %p433 = pneg %p155
        %p434 = pneg %p152
        %p435 = pneg %p176
        %p436 = pneg %p173
        %p437 = pneg %p197
        %p438 = pneg %p194
        %p439 = pneg %p218
        %p440 = pneg %p215
        %p441 = pneg %p239
        %p442 = pneg %p236
        %p443 = pneg %p260
        %p444 = pneg %p257
        %p445 = pneg %p281
        %p446 = pneg %p278
        %p447 = pneg %p309
        %p448 = pneg %p306
        %s449 = sand.u32 %s296, 1
        %s450 = scalar_lea.sflag [#allocation6], %s449
        %s451 = sand.u32 %s296, 1
        %s452 = smul.addr %s451, 4
        %s453 = scalar_lea.vmem [#allocation5], %s452
        %p454 = pneg %p337
        %p455 = pneg %p334
        %s456 = sand.u32 %s324, 1
        %s457 = scalar_lea.sflag [#allocation8], %s456
        %s458 = sand.u32 %s324, 1
        %s459 = smul.addr %s458, 256
        %s460 = scalar_lea.vmem [#allocation7], %s459
        %s461 = smul.u32 16, %s36
        %p462 = scmp.lt.s32.totalorder %s35, 1
        %s463 = scalar_select %p462, %s35, 1
        %p464 = scmp.lt.s32.totalorder %s461, 31
        %s465 = scalar_select %p464, %s461, 31
        %s466 = smul.addr %s463, 32
        %s467 = sadd.s32 %s465, %s466
        %s468 = smul.addr %s467, 8
        %s469 = scalar_lea.vmem %s0, %s468
        %s470 = smul.u32 16, %s36
        %p471 = scmp.lt.s32.totalorder %s35, 1
        %s472 = scalar_select %p471, %s35, 1
        %s473 = smul.addr %s472, 2
        %s474 = smul.addr %s473, 4
        %s475 = scalar_lea.vmem %s1, %s474
        %s476 = smul.u32 16, %s36
        %p477 = scmp.eq.s32.totalorder %s36, 0
        // Predicated region
        $region65: #{tpu_custom_call.1} parent=63 // pred_check
          %p478 = pneg %p477
        $region66: #{tpu_custom_call.1} parent=63 // pred_check_branch
          %480 = sbr.rel (%p478) target = $region68
        $region67: #{tpu_custom_call.1} parent=63 // pred_region
          %v481 = vld [vmem:[%s475] sm:$0xff]
          %v482 = vld [vmem:[%s4] sm:$0xff]
          %v483 = vld [vmem:[%s5] sm:$0xff]
          %485 = vset.pattern.permute.xlu0 0
          %486 = vperm.xlu0 %485, %v483
          %v487 = vpop.permute.xlu0 %486
          %v490 = vcombine.high %v481, %v481
          %vm491 = vcmask 31744
          %v493 = vsel %vm491, %v482, 0
          %vm495 = vcmask 1043456
          %v496 = vsel %vm495, %v481, 0
          %v498 = vsel %vm495, %v490, 0
          %500 = vmatprep.subr.mxu0 %v498
          %501 = vmatpush1.msra.mxu0 %v496
          %502 = vmatprep.subr.mxu0 0.0
          %503 = vmatpush1.msra.mxu0 0.0
          %504 = vmatprep.subr.mxu0 0.0
          %505 = vmatpush1.msra.mxu0 0.0
          %506 = vmatprep.subr.mxu0 0.0
          %507 = vmatpush1.msra.mxu0 0.0
          %508 = vmatprep.subr.mxu0 0.0
          %509 = vmatpush1.msra.mxu0 0.0
          %510 = vmatprep.subr.mxu0 0.0
          %511 = vmatpush1.msra.mxu0 0.0
          %512 = vmatprep.subr.mxu0 0.0
          %513 = vmatpush1.msra.mxu0 0.0
          %514 = vmatprep.subr.mxu0 0.0
          %515 = vmatpush1.msra.mxu0 0.0
          %516 = vmatprep.subr.mxu0 0.0
          %517 = vmatpush1.msra.mxu0 0.0
          %518 = vmatprep.subr.mxu0 0.0
          %519 = vmatpush1.msra.mxu0 0.0
          %520 = vmatprep.subr.mxu0 0.0
          %521 = vmatpush1.msra.mxu0 0.0
          %522 = vmatprep.subr.mxu0 0.0
          %523 = vmatpush1.msra.mxu0 0.0
          %524 = vmatprep.subr.mxu0 0.0
          %525 = vmatpush1.msra.mxu0 0.0
          %526 = vmatprep.subr.mxu0 0.0
          %527 = vmatpush1.msra.mxu0 0.0
          %528 = vmatprep.subr.mxu0 0.0
          %529 = vmatpush1.msra.mxu0 0.0
          %530 = vmatprep.subr.mxu0 0.0
          %531 = vmatpush1.msra.mxu0 0.0
          %532 = vmatprep.subr.mxu0 0.0
          %533 = vmatpush1.msra.mxu0 0.0
          %534 = vmatprep.subr.mxu0 0.0
          %535 = vmatpush1.msra.mxu0 0.0
          %536 = vmatprep.subr.mxu0 0.0
          %537 = vmatpush1.msra.mxu0 0.0
          %538 = vmatprep.subr.mxu0 0.0
          %539 = vmatpush1.msra.mxu0 0.0
          %540 = vmatprep.subr.mxu0 0.0
          %541 = vmatpush1.msra.mxu0 0.0
          %542 = vmatprep.subr.mxu0 0.0
          %543 = vmatpush1.msra.mxu0 0.0
          %544 = vmatprep.subr.mxu0 0.0
          %545 = vmatpush1.msra.mxu0 0.0
          %546 = vmatprep.subr.mxu0 0.0
          %547 = vmatpush1.msra.mxu0 0.0
          %548 = vmatprep.subr.mxu0 0.0
          %549 = vmatpush1.msra.mxu0 0.0
          %550 = vmatprep.subr.mxu0 0.0
          %551 = vmatpush1.msra.mxu0 0.0
          %552 = vmatprep.subr.mxu0 0.0
          %553 = vmatpush1.msra.mxu0 0.0
          %554 = vmatprep.subr.mxu0 0.0
          %555 = vmatpush1.msra.mxu0 0.0
          %556 = vmatprep.subr.mxu0 0.0
          %557 = vmatpush1.msra.mxu0 0.0
          %558 = vmatprep.subr.mxu0 0.0
          %559 = vmatpush1.msra.mxu0 0.0
          %560 = vmatprep.subr.mxu0 0.0
          %561 = vmatpush1.msra.mxu0 0.0
          %562 = vmatprep.subr.mxu0 0.0
          %563 = vmatpush1.msra.mxu0 0.0
          %564 = vmatprep.mubr.f32.mxu0 0.0
          %565 = vmatmul.mubr.f32.gmra.mrb[0].mxu0 %v493
          %v566 = vpop.f32.mrb[0].mxu0
          %v567 = vadd.f32 %v487, %v566
          %v568 = vpop.f32.mrb[0].mxu0
          %v569 = vadd.f32 %v487, %v568
          %570 = vdwg.mxu0
          %571 = vst [vmem:[#allocation2] sm:$0xff] %v567
          %572 = vst [vmem:[#allocation2 + $0x8] sm:$0xff] %v569
          %v573 = vld [vmem:[%s6] sm:$0xff]
          %v574 = vld [vmem:[%s7] sm:$0xff]
          %576 = vset.pattern.permute.xlu0 0
          %577 = vperm.xlu0 %576, %v574
          %v578 = vpop.permute.xlu0 %577
          %v581 = vsel %vm491, %v573, 0
          %583 = vmatprep.subr.mxu0 %v498
          %584 = vmatpush1.msra.mxu0 %v496
          %585 = vmatprep.subr.mxu0 0.0
          %586 = vmatpush1.msra.mxu0 0.0
          %587 = vmatprep.subr.mxu0 0.0
          %588 = vmatpush1.msra.mxu0 0.0
          %589 = vmatprep.subr.mxu0 0.0
          %590 = vmatpush1.msra.mxu0 0.0
          %591 = vmatprep.subr.mxu0 0.0
          %592 = vmatpush1.msra.mxu0 0.0
          %593 = vmatprep.subr.mxu0 0.0
          %594 = vmatpush1.msra.mxu0 0.0
          %595 = vmatprep.subr.mxu0 0.0
          %596 = vmatpush1.msra.mxu0 0.0
          %597 = vmatprep.subr.mxu0 0.0
          %598 = vmatpush1.msra.mxu0 0.0
          %599 = vmatprep.subr.mxu0 0.0
          %600 = vmatpush1.msra.mxu0 0.0
          %601 = vmatprep.subr.mxu0 0.0
          %602 = vmatpush1.msra.mxu0 0.0
          %603 = vmatprep.subr.mxu0 0.0
          %604 = vmatpush1.msra.mxu0 0.0
          %605 = vmatprep.subr.mxu0 0.0
          %606 = vmatpush1.msra.mxu0 0.0
          %607 = vmatprep.subr.mxu0 0.0
          %608 = vmatpush1.msra.mxu0 0.0
          %609 = vmatprep.subr.mxu0 0.0
          %610 = vmatpush1.msra.mxu0 0.0
          %611 = vmatprep.subr.mxu0 0.0
          %612 = vmatpush1.msra.mxu0 0.0
          %613 = vmatprep.subr.mxu0 0.0
          %614 = vmatpush1.msra.mxu0 0.0
          %615 = vmatprep.subr.mxu0 0.0
          %616 = vmatpush1.msra.mxu0 0.0
          %617 = vmatprep.subr.mxu0 0.0
          %618 = vmatpush1.msra.mxu0 0.0
          %619 = vmatprep.subr.mxu0 0.0
          %620 = vmatpush1.msra.mxu0 0.0
          %621 = vmatprep.subr.mxu0 0.0
          %622 = vmatpush1.msra.mxu0 0.0
          %623 = vmatprep.subr.mxu0 0.0
          %624 = vmatpush1.msra.mxu0 0.0
          %625 = vmatprep.subr.mxu0 0.0
          %626 = vmatpush1.msra.mxu0 0.0
          %627 = vmatprep.subr.mxu0 0.0
          %628 = vmatpush1.msra.mxu0 0.0
          %629 = vmatprep.subr.mxu0 0.0
          %630 = vmatpush1.msra.mxu0 0.0
          %631 = vmatprep.subr.mxu0 0.0
          %632 = vmatpush1.msra.mxu0 0.0
          %633 = vmatprep.subr.mxu0 0.0
          %634 = vmatpush1.msra.mxu0 0.0
          %635 = vmatprep.subr.mxu0 0.0
          %636 = vmatpush1.msra.mxu0 0.0
          %637 = vmatprep.subr.mxu0 0.0
          %638 = vmatpush1.msra.mxu0 0.0
          %639 = vmatprep.subr.mxu0 0.0
          %640 = vmatpush1.msra.mxu0 0.0
          %641 = vmatprep.subr.mxu0 0.0
          %642 = vmatpush1.msra.mxu0 0.0
          %643 = vmatprep.subr.mxu0 0.0
          %644 = vmatpush1.msra.mxu0 0.0
          %645 = vmatprep.subr.mxu0 0.0
          %646 = vmatpush1.msra.mxu0 0.0
          %647 = vmatprep.mubr.f32.mxu0 0.0
          %648 = vmatmul.mubr.f32.gmra.mrb[0].mxu0 %v581
          %v649 = vpop.f32.mrb[0].mxu0
          %v650 = vadd.f32 %v578, %v649
          %v651 = vpop.f32.mrb[0].mxu0
          %v652 = vadd.f32 %v578, %v651
          %653 = vdwg.mxu0
          %v654 = vld [vmem:[%s8] sm:$0xf]
          %vm655 = vcmask 64512
          %v657 = vsel %vm655, %v654, 0
          %659 = vmatprep.subr.mxu0 %v652
          %660 = vmatpush1.msra.mxu0 %v650
          %661 = vmatprep.subr.mxu0 0.0
          %662 = vmatpush1.msra.mxu0 0.0
          %663 = vmatprep.subr.mxu0 0.0
          %664 = vmatpush1.msra.mxu0 0.0
          %665 = vmatprep.subr.mxu0 0.0
          %666 = vmatpush1.msra.mxu0 0.0
          %667 = vmatprep.subr.mxu0 0.0
          %668 = vmatpush1.msra.mxu0 0.0
          %669 = vmatprep.subr.mxu0 0.0
          %670 = vmatpush1.msra.mxu0 0.0
          %671 = vmatprep.subr.mxu0 0.0
          %672 = vmatpush1.msra.mxu0 0.0
          %673 = vmatprep.subr.mxu0 0.0
          %674 = vmatpush1.msra.mxu0 0.0
          %675 = vmatprep.subr.mxu0 0.0
          %676 = vmatpush1.msra.mxu0 0.0
          %677 = vmatprep.subr.mxu0 0.0
          %678 = vmatpush1.msra.mxu0 0.0
          %679 = vmatprep.subr.mxu0 0.0
          %680 = vmatpush1.msra.mxu0 0.0
          %681 = vmatprep.subr.mxu0 0.0
          %682 = vmatpush1.msra.mxu0 0.0
          %683 = vmatprep.subr.mxu0 0.0
          %684 = vmatpush1.msra.mxu0 0.0
          %685 = vmatprep.subr.mxu0 0.0
          %686 = vmatpush1.msra.mxu0 0.0
          %687 = vmatprep.subr.mxu0 0.0
          %688 = vmatpush1.msra.mxu0 0.0
          %689 = vmatprep.subr.mxu0 0.0
          %690 = vmatpush1.msra.mxu0 0.0
          %691 = vmatprep.subr.mxu0 0.0
          %692 = vmatpush1.msra.mxu0 0.0
          %693 = vmatprep.subr.mxu0 0.0
          %694 = vmatpush1.msra.mxu0 0.0
          %695 = vmatprep.subr.mxu0 0.0
          %696 = vmatpush1.msra.mxu0 0.0
          %697 = vmatprep.subr.mxu0 0.0
          %698 = vmatpush1.msra.mxu0 0.0
          %699 = vmatprep.subr.mxu0 0.0
          %700 = vmatpush1.msra.mxu0 0.0
          %701 = vmatprep.subr.mxu0 0.0
          %702 = vmatpush1.msra.mxu0 0.0
          %703 = vmatprep.subr.mxu0 0.0
          %704 = vmatpush1.msra.mxu0 0.0
          %705 = vmatprep.subr.mxu0 0.0
          %706 = vmatpush1.msra.mxu0 0.0
          %707 = vmatprep.subr.mxu0 0.0
          %708 = vmatpush1.msra.mxu0 0.0
          %709 = vmatprep.subr.mxu0 0.0
          %710 = vmatpush1.msra.mxu0 0.0
          %711 = vmatprep.subr.mxu0 0.0
          %712 = vmatpush1.msra.mxu0 0.0
          %713 = vmatprep.subr.mxu0 0.0
          %714 = vmatpush1.msra.mxu0 0.0
          %715 = vmatprep.subr.mxu0 0.0
          %716 = vmatpush1.msra.mxu0 0.0
          %717 = vmatprep.subr.mxu0 0.0
          %718 = vmatpush1.msra.mxu0 0.0
          %719 = vmatprep.subr.mxu0 0.0
          %720 = vmatpush1.msra.mxu0 0.0
          %721 = vmatprep.subr.mxu0 0.0
          %722 = vmatpush1.msra.mxu0 0.0
          %723 = vmatprep.mubr.f32.mxu0 0.0
          %724 = vmatmul.mubr.f32.gmra.mrb[0].mxu0 %v657
          %v725 = vpop.f32.mrb[0].mxu0
          %v726 = vadd.f32 0.0, %v725
          %v727 = vpop.f32.mrb[0].mxu0
          %v728 = vadd.f32 0.0, %v727
          %729 = vdwg.mxu0
          %v732 = vcombine.low %v726, %v728
          %734 = vst [vmem:[#allocation3] sm:$0xff] %v732
        $region68: #{tpu_custom_call.1} parent=63 // pred_fallthru
          _
        %s735 = smul.u32 %s36, 128
        %v736 = vld [vmem:[%s469] sm:$0xff]
        %v737 = vld [vmem:[%s469 + $0x8] sm:$0xff]
        %v738 = vld [vmem:[%s469 + $0x10] sm:$0xff]
        %v739 = vld [vmem:[%s469 + $0x18] sm:$0xff]
        %v740 = vld [vmem:[%s469 + $0x20] sm:$0xff]
        %v741 = vld [vmem:[%s469 + $0x28] sm:$0xff]
        %v742 = vld [vmem:[%s469 + $0x30] sm:$0xff]
        %v743 = vld [vmem:[%s469 + $0x38] sm:$0xff]
        %v744 = vld [vmem:[%s469 + $0x40] sm:$0xff]
        %v745 = vld [vmem:[%s469 + $0x48] sm:$0xff]
        %v746 = vld [vmem:[%s469 + $0x50] sm:$0xff]
        %v747 = vld [vmem:[%s469 + $0x58] sm:$0xff]
        %v748 = vld [vmem:[%s469 + $0x60] sm:$0xff]
        %v749 = vld [vmem:[%s469 + $0x68] sm:$0xff]
        %v750 = vld [vmem:[%s469 + $0x70] sm:$0xff]
        %v751 = vld [vmem:[%s469 + $0x78] sm:$0xff]
        %v752 = vld [vmem:[%s2] sm:$0xf]
        %v753 = vld [vmem:[%s3] sm:$0x1]
        %v755 = vlaneseq
        %v756 = vshrl.u32 %v755, 7
        %v757 = vsub.s32 0, %v756
        %v758 = vrot.slane %v753, %v757
        %vm760 = vcmask 31744
        %v762 = vsel %vm760, %v736, 0
        %v765 = vsel %vm760, %v737, 0
        %v768 = vsel %vm760, %v738, 0
        %v771 = vsel %vm760, %v739, 0
        %v774 = vsel %vm760, %v740, 0
        %v777 = vsel %vm760, %v741, 0
        %v780 = vsel %vm760, %v742, 0
        %v783 = vsel %vm760, %v743, 0
        %v786 = vsel %vm760, %v744, 0
        %v789 = vsel %vm760, %v745, 0
        %v792 = vsel %vm760, %v746, 0
        %v795 = vsel %vm760, %v747, 0
        %v798 = vsel %vm760, %v748, 0
        %v801 = vsel %vm760, %v749, 0
        %v804 = vsel %vm760, %v750, 0
        %v807 = vsel %vm760, %v751, 0
        %vm809 = vcmask 1043456
        %v811 = vsel %vm809, %v752, 0
        %813 = vmatprep.subr.mxu0 0.0
        %814 = vmatpush1.msra.mxu0 %v811
        %815 = vmatprep.subr.mxu0 0.0
        %816 = vmatpush1.msra.mxu0 0.0
        %817 = vmatprep.subr.mxu0 0.0
        %818 = vmatpush1.msra.mxu0 0.0
        %819 = vmatprep.subr.mxu0 0.0
        %820 = vmatpush1.msra.mxu0 0.0
        %821 = vmatprep.subr.mxu0 0.0
        %822 = vmatpush1.msra.mxu0 0.0
        %823 = vmatprep.subr.mxu0 0.0
        %824 = vmatpush1.msra.mxu0 0.0
        %825 = vmatprep.subr.mxu0 0.0
        %826 = vmatpush1.msra.mxu0 0.0
        %827 = vmatprep.subr.mxu0 0.0
        %828 = vmatpush1.msra.mxu0 0.0
        %829 = vmatprep.subr.mxu0 0.0
        %830 = vmatpush1.msra.mxu0 0.0
        %831 = vmatprep.subr.mxu0 0.0
        %832 = vmatpush1.msra.mxu0 0.0
        %833 = vmatprep.subr.mxu0 0.0
        %834 = vmatpush1.msra.mxu0 0.0
        %835 = vmatprep.subr.mxu0 0.0
        %836 = vmatpush1.msra.mxu0 0.0
        %837 = vmatprep.subr.mxu0 0.0
        %838 = vmatpush1.msra.mxu0 0.0
        %839 = vmatprep.subr.mxu0 0.0
        %840 = vmatpush1.msra.mxu0 0.0
        %841 = vmatprep.subr.mxu0 0.0
        %842 = vmatpush1.msra.mxu0 0.0
        %843 = vmatprep.subr.mxu0 0.0
        %844 = vmatpush1.msra.mxu0 0.0
        %845 = vmatprep.subr.mxu0 0.0
        %846 = vmatpush1.msra.mxu0 0.0
        %847 = vmatprep.subr.mxu0 0.0
        %848 = vmatpush1.msra.mxu0 0.0
        %849 = vmatprep.subr.mxu0 0.0
        %850 = vmatpush1.msra.mxu0 0.0
        %851 = vmatprep.subr.mxu0 0.0
        %852 = vmatpush1.msra.mxu0 0.0
        %853 = vmatprep.subr.mxu0 0.0
        %854 = vmatpush1.msra.mxu0 0.0
        %855 = vmatprep.subr.mxu0 0.0
        %856 = vmatpush1.msra.mxu0 0.0
        %857 = vmatprep.subr.mxu0 0.0
        %858 = vmatpush1.msra.mxu0 0.0
        %859 = vmatprep.subr.mxu0 0.0
        %860 = vmatpush1.msra.mxu0 0.0
        %861 = vmatprep.subr.mxu0 0.0
        %862 = vmatpush1.msra.mxu0 0.0
        %863 = vmatprep.subr.mxu0 0.0
        %864 = vmatpush1.msra.mxu0 0.0
        %865 = vmatprep.subr.mxu0 0.0
        %866 = vmatpush1.msra.mxu0 0.0
        %867 = vmatprep.subr.mxu0 0.0
        %868 = vmatpush1.msra.mxu0 0.0
        %869 = vmatprep.subr.mxu0 0.0
        %870 = vmatpush1.msra.mxu0 0.0
        %871 = vmatprep.subr.mxu0 0.0
        %872 = vmatpush1.msra.mxu0 0.0
        %873 = vmatprep.subr.mxu0 0.0
        %874 = vmatpush1.msra.mxu0 0.0
        %875 = vmatprep.subr.mxu0 0.0
        %876 = vmatpush1.msra.mxu0 0.0
        %877 = vmatprep.mubr.f32.mxu0 0.0
        %878 = vmatmul.mubr.f32.gmra.mrb[0].mxu0 %v762
        %v879 = vpop.f32.mrb[0].mxu0
        %v880 = vadd.f32 %v758, %v879
        %v881 = vpop.f32.mrb[0].mxu0
        %882 = vmatprep.mubr.f32.mxu0 0.0
        %883 = vmatmul.mubr.f32.gmra.mrb[0].mxu0 %v765
        %v884 = vpop.f32.mrb[0].mxu0
        %v885 = vadd.f32 %v758, %v884
        %v886 = vpop.f32.mrb[0].mxu0
        %887 = vmatprep.mubr.f32.mxu0 0.0
        %888 = vmatmul.mubr.f32.gmra.mrb[0].mxu0 %v768
        %v889 = vpop.f32.mrb[0].mxu0
        %v890 = vadd.f32 %v758, %v889
        %v891 = vpop.f32.mrb[0].mxu0
        %892 = vmatprep.mubr.f32.mxu0 0.0
        %893 = vmatmul.mubr.f32.gmra.mrb[0].mxu0 %v771
        %v894 = vpop.f32.mrb[0].mxu0
        %v895 = vadd.f32 %v758, %v894
        %v896 = vpop.f32.mrb[0].mxu0
        %897 = vmatprep.mubr.f32.mxu0 0.0
        %898 = vmatmul.mubr.f32.gmra.mrb[0].mxu0 %v774
        %v899 = vpop.f32.mrb[0].mxu0
        %v900 = vadd.f32 %v758, %v899
        %v901 = vpop.f32.mrb[0].mxu0
        %902 = vmatprep.mubr.f32.mxu0 0.0
        %903 = vmatmul.mubr.f32.gmra.mrb[0].mxu0 %v777
        %v904 = vpop.f32.mrb[0].mxu0
        %v905 = vadd.f32 %v758, %v904
        %v906 = vpop.f32.mrb[0].mxu0
        %907 = vmatprep.mubr.f32.mxu0 0.0
        %908 = vmatmul.mubr.f32.gmra.mrb[0].mxu0 %v780
        %v909 = vpop.f32.mrb[0].mxu0
        %v910 = vadd.f32 %v758, %v909
        %v911 = vpop.f32.mrb[0].mxu0
        %912 = vmatprep.mubr.f32.mxu0 0.0
        %913 = vmatmul.mubr.f32.gmra.mrb[0].mxu0 %v783
        %v914 = vpop.f32.mrb[0].mxu0
        %v915 = vadd.f32 %v758, %v914
        %v916 = vpop.f32.mrb[0].mxu0
        %917 = vmatprep.mubr.f32.mxu0 0.0
        %918 = vmatmul.mubr.f32.gmra.mrb[0].mxu0 %v786
        %v919 = vpop.f32.mrb[0].mxu0
        %v920 = vadd.f32 %v758, %v919
        %v921 = vpop.f32.mrb[0].mxu0
        %922 = vmatprep.mubr.f32.mxu0 0.0
        %923 = vmatmul.mubr.f32.gmra.mrb[0].mxu0 %v789
        %v924 = vpop.f32.mrb[0].mxu0
        %v925 = vadd.f32 %v758, %v924
        %v926 = vpop.f32.mrb[0].mxu0
        %927 = vmatprep.mubr.f32.mxu0 0.0
        %928 = vmatmul.mubr.f32.gmra.mrb[0].mxu0 %v792
        %v929 = vpop.f32.mrb[0].mxu0
        %v930 = vadd.f32 %v758, %v929
        %v931 = vpop.f32.mrb[0].mxu0
        %932 = vmatprep.mubr.f32.mxu0 0.0
        %933 = vmatmul.mubr.f32.gmra.mrb[0].mxu0 %v795
        %v934 = vpop.f32.mrb[0].mxu0
        %v935 = vadd.f32 %v758, %v934
        %v936 = vpop.f32.mrb[0].mxu0
        %937 = vmatprep.mubr.f32.mxu0 0.0
        %938 = vmatmul.mubr.f32.gmra.mrb[0].mxu0 %v798
        %v939 = vpop.f32.mrb[0].mxu0
        %v940 = vadd.f32 %v758, %v939
        %v941 = vpop.f32.mrb[0].mxu0
        %942 = vmatprep.mubr.f32.mxu0 0.0
        %943 = vmatmul.mubr.f32.gmra.mrb[0].mxu0 %v801
        %v944 = vpop.f32.mrb[0].mxu0
        %v945 = vadd.f32 %v758, %v944
        %v946 = vpop.f32.mrb[0].mxu0
        %947 = vmatprep.mubr.f32.mxu0 0.0
        %948 = vmatmul.mubr.f32.gmra.mrb[0].mxu0 %v804
        %v949 = vpop.f32.mrb[0].mxu0
        %v950 = vadd.f32 %v758, %v949
        %v951 = vpop.f32.mrb[0].mxu0
        %952 = vmatprep.mubr.f32.mxu0 0.0
        %953 = vmatmul.mubr.f32.gmra.mrb[0].mxu0 %v807
        %v954 = vpop.f32.mrb[0].mxu0
        %v955 = vadd.f32 %v758, %v954
        %v956 = vpop.f32.mrb[0].mxu0
        %957 = vdwg.mxu0
        %v958 = vld [vmem:[#allocation2] sm:$0xff]
        %v959 = vld [vmem:[#allocation2 + $0x8] sm:$0xff]
        %vm960 = vcmask 64512
        %v962 = vsel %vm960, %v880, 0
        %v965 = vsel %vm960, %v885, 0
        %v968 = vsel %vm960, %v890, 0
        %v971 = vsel %vm960, %v895, 0
        %v974 = vsel %vm960, %v900, 0
        %v977 = vsel %vm960, %v905, 0
        %v980 = vsel %vm960, %v910, 0
        %v983 = vsel %vm960, %v915, 0
        %v986 = vsel %vm960, %v920, 0
        %v989 = vsel %vm960, %v925, 0
        %v992 = vsel %vm960, %v930, 0
        %v995 = vsel %vm960, %v935, 0
        %v998 = vsel %vm960, %v940, 0
        %v1001 = vsel %vm960, %v945, 0
        %v1004 = vsel %vm960, %v950, 0
        %v1007 = vsel %vm960, %v955, 0
        %1009 = vmatprep.subr.mxu0 %v959
        %1010 = vmatpush1.msra.mxu0 %v958
        %1011 = vmatprep.subr.mxu0 0.0
        %1012 = vmatpush1.msra.mxu0 0.0
        %1013 = vmatprep.subr.mxu0 0.0
        %1014 = vmatpush1.msra.mxu0 0.0
        %1015 = vmatprep.subr.mxu0 0.0
        %1016 = vmatpush1.msra.mxu0 0.0
        %1017 = vmatprep.subr.mxu0 0.0
        %1018 = vmatpush1.msra.mxu0 0.0
        %1019 = vmatprep.subr.mxu0 0.0
        %1020 = vmatpush1.msra.mxu0 0.0
        %1021 = vmatprep.subr.mxu0 0.0
        %1022 = vmatpush1.msra.mxu0 0.0
        %1023 = vmatprep.subr.mxu0 0.0
        %1024 = vmatpush1.msra.mxu0 0.0
        %1025 = vmatprep.subr.mxu0 0.0
        %1026 = vmatpush1.msra.mxu0 0.0
        %1027 = vmatprep.subr.mxu0 0.0
        %1028 = vmatpush1.msra.mxu0 0.0
        %1029 = vmatprep.subr.mxu0 0.0
        %1030 = vmatpush1.msra.mxu0 0.0
        %1031 = vmatprep.subr.mxu0 0.0
        %1032 = vmatpush1.msra.mxu0 0.0
        %1033 = vmatprep.subr.mxu0 0.0
        %1034 = vmatpush1.msra.mxu0 0.0
        %1035 = vmatprep.subr.mxu0 0.0
        %1036 = vmatpush1.msra.mxu0 0.0
        %1037 = vmatprep.subr.mxu0 0.0
        %1038 = vmatpush1.msra.mxu0 0.0
        %1039 = vmatprep.subr.mxu0 0.0
        %1040 = vmatpush1.msra.mxu0 0.0
        %1041 = vmatprep.subr.mxu0 0.0
        %1042 = vmatpush1.msra.mxu0 0.0
        %1043 = vmatprep.subr.mxu0 0.0
        %1044 = vmatpush1.msra.mxu0 0.0
        %1045 = vmatprep.subr.mxu0 0.0
        %1046 = vmatpush1.msra.mxu0 0.0
        %1047 = vmatprep.subr.mxu0 0.0
        %1048 = vmatpush1.msra.mxu0 0.0
        %1049 = vmatprep.subr.mxu0 0.0
        %1050 = vmatpush1.msra.mxu0 0.0
        %1051 = vmatprep.subr.mxu0 0.0
        %1052 = vmatpush1.msra.mxu0 0.0
        %1053 = vmatprep.subr.mxu0 0.0
        %1054 = vmatpush1.msra.mxu0 0.0
        %1055 = vmatprep.subr.mxu0 0.0
        %1056 = vmatpush1.msra.mxu0 0.0
        %1057 = vmatprep.subr.mxu0 0.0
        %1058 = vmatpush1.msra.mxu0 0.0
        %1059 = vmatprep.subr.mxu0 0.0
        %1060 = vmatpush1.msra.mxu0 0.0
        %1061 = vmatprep.subr.mxu0 0.0
        %1062 = vmatpush1.msra.mxu0 0.0
        %1063 = vmatprep.subr.mxu0 0.0
        %1064 = vmatpush1.msra.mxu0 0.0
        %1065 = vmatprep.subr.mxu0 0.0
        %1066 = vmatpush1.msra.mxu0 0.0
        %1067 = vmatprep.subr.mxu0 0.0
        %1068 = vmatpush1.msra.mxu0 0.0
        %1069 = vmatprep.subr.mxu0 0.0
        %1070 = vmatpush1.msra.mxu0 0.0
        %1071 = vmatprep.subr.mxu0 0.0
        %1072 = vmatpush1.msra.mxu0 0.0
        %1073 = vmatprep.mubr.f32.mxu0 0.0
        %1074 = vmatmul.mubr.f32.gmra.mrb[0].mxu0 %v962
        %v1075 = vpop.f32.mrb[0].mxu0
        %v1076 = vadd.f32 0.0, %v1075
        %v1077 = vpop.f32.mrb[0].mxu0
        %v1078 = vadd.f32 0.0, %v1077
        %1079 = vmatprep.mubr.f32.mxu0 0.0
        %1080 = vmatmul.mubr.f32.gmra.mrb[0].mxu0 %v965
        %v1081 = vpop.f32.mrb[0].mxu0
        %v1082 = vadd.f32 0.0, %v1081
        %v1083 = vpop.f32.mrb[0].mxu0
        %v1084 = vadd.f32 0.0, %v1083
        %1085 = vmatprep.mubr.f32.mxu0 0.0
        %1086 = vmatmul.mubr.f32.gmra.mrb[0].mxu0 %v968
        %v1087 = vpop.f32.mrb[0].mxu0
        %v1088 = vadd.f32 0.0, %v1087
        %v1089 = vpop.f32.mrb[0].mxu0
        %v1090 = vadd.f32 0.0, %v1089
        %1091 = vmatprep.mubr.f32.mxu0 0.0
        %1092 = vmatmul.mubr.f32.gmra.mrb[0].mxu0 %v971
        %v1093 = vpop.f32.mrb[0].mxu0
        %v1094 = vadd.f32 0.0, %v1093
        %v1095 = vpop.f32.mrb[0].mxu0
        %v1096 = vadd.f32 0.0, %v1095
        %1097 = vmatprep.mubr.f32.mxu0 0.0
        %1098 = vmatmul.mubr.f32.gmra.mrb[0].mxu0 %v974
        %v1099 = vpop.f32.mrb[0].mxu0
        %v1100 = vadd.f32 0.0, %v1099
        %v1101 = vpop.f32.mrb[0].mxu0
        %v1102 = vadd.f32 0.0, %v1101
        %1103 = vmatprep.mubr.f32.mxu0 0.0
        %1104 = vmatmul.mubr.f32.gmra.mrb[0].mxu0 %v977
        %v1105 = vpop.f32.mrb[0].mxu0
        %v1106 = vadd.f32 0.0, %v1105
        %v1107 = vpop.f32.mrb[0].mxu0
        %v1108 = vadd.f32 0.0, %v1107
        %1109 = vmatprep.mubr.f32.mxu0 0.0
        %1110 = vmatmul.mubr.f32.gmra.mrb[0].mxu0 %v980
        %v1111 = vpop.f32.mrb[0].mxu0
        %v1112 = vadd.f32 0.0, %v1111
        %v1113 = vpop.f32.mrb[0].mxu0
        %v1114 = vadd.f32 0.0, %v1113
        %1115 = vmatprep.mubr.f32.mxu0 0.0
        %1116 = vmatmul.mubr.f32.gmra.mrb[0].mxu0 %v983
        %v1117 = vpop.f32.mrb[0].mxu0
        %v1118 = vadd.f32 0.0, %v1117
        %v1119 = vpop.f32.mrb[0].mxu0
        %v1120 = vadd.f32 0.0, %v1119
        %1121 = vmatprep.mubr.f32.mxu0 0.0
        %1122 = vmatmul.mubr.f32.gmra.mrb[0].mxu0 %v986
        %v1123 = vpop.f32.mrb[0].mxu0
        %v1124 = vadd.f32 0.0, %v1123
        %v1125 = vpop.f32.mrb[0].mxu0
        %v1126 = vadd.f32 0.0, %v1125
        %1127 = vmatprep.mubr.f32.mxu0 0.0
        %1128 = vmatmul.mubr.f32.gmra.mrb[0].mxu0 %v989
        %v1129 = vpop.f32.mrb[0].mxu0
        %v1130 = vadd.f32 0.0, %v1129
        %v1131 = vpop.f32.mrb[0].mxu0
        %v1132 = vadd.f32 0.0, %v1131
        %1133 = vmatprep.mubr.f32.mxu0 0.0
        %1134 = vmatmul.mubr.f32.gmra.mrb[0].mxu0 %v992
        %v1135 = vpop.f32.mrb[0].mxu0
        %v1136 = vadd.f32 0.0, %v1135
        %v1137 = vpop.f32.mrb[0].mxu0
        %v1138 = vadd.f32 0.0, %v1137
        %1139 = vmatprep.mubr.f32.mxu0 0.0
        %1140 = vmatmul.mubr.f32.gmra.mrb[0].mxu0 %v995
        %v1141 = vpop.f32.mrb[0].mxu0
        %v1142 = vadd.f32 0.0, %v1141
        %v1143 = vpop.f32.mrb[0].mxu0
        %v1144 = vadd.f32 0.0, %v1143
        %1145 = vmatprep.mubr.f32.mxu0 0.0
        %1146 = vmatmul.mubr.f32.gmra.mrb[0].mxu0 %v998
        %v1147 = vpop.f32.mrb[0].mxu0
        %v1148 = vadd.f32 0.0, %v1147
        %v1149 = vpop.f32.mrb[0].mxu0
        %v1150 = vadd.f32 0.0, %v1149
        %1151 = vmatprep.mubr.f32.mxu0 0.0
        %1152 = vmatmul.mubr.f32.gmra.mrb[0].mxu0 %v1001
        %v1153 = vpop.f32.mrb[0].mxu0
        %v1154 = vadd.f32 0.0, %v1153
        %v1155 = vpop.f32.mrb[0].mxu0
        %v1156 = vadd.f32 0.0, %v1155
        %1157 = vmatprep.mubr.f32.mxu0 0.0
        %1158 = vmatmul.mubr.f32.gmra.mrb[0].mxu0 %v1004
        %v1159 = vpop.f32.mrb[0].mxu0
        %v1160 = vadd.f32 0.0, %v1159
        %v1161 = vpop.f32.mrb[0].mxu0
        %v1162 = vadd.f32 0.0, %v1161
        %1163 = vmatprep.mubr.f32.mxu0 0.0
        %1164 = vmatmul.mubr.f32.gmra.mrb[0].mxu0 %v1007
        %v1165 = vpop.f32.mrb[0].mxu0
        %v1166 = vadd.f32 0.0, %v1165
        %v1167 = vpop.f32.mrb[0].mxu0
        %v1168 = vadd.f32 0.0, %v1167
        %1169 = vdwg.mxu0
        %v1170 = vmax.f32 %v1076, %v1078
        %1171 = vmax.xlane.f32.xlu0 %v1170
        %v1172 = vpop.xlane.xlu0 %1171
        %v1173 = vmax.f32 %v1082, %v1084
        %1174 = vmax.xlane.f32.xlu0 %v1173
        %v1175 = vpop.xlane.xlu0 %1174
        %v1176 = vmax.f32 %v1088, %v1090
        %1177 = vmax.xlane.f32.xlu0 %v1176
        %v1178 = vpop.xlane.xlu0 %1177
        %v1179 = vmax.f32 %v1094, %v1096
        %1180 = vmax.xlane.f32.xlu0 %v1179
        %v1181 = vpop.xlane.xlu0 %1180
        %v1182 = vmax.f32 %v1100, %v1102
        %1183 = vmax.xlane.f32.xlu0 %v1182
        %v1184 = vpop.xlane.xlu0 %1183
        %v1185 = vmax.f32 %v1106, %v1108
        %1186 = vmax.xlane.f32.xlu0 %v1185
        %v1187 = vpop.xlane.xlu0 %1186
        %v1188 = vmax.f32 %v1112, %v1114
        %1189 = vmax.xlane.f32.xlu0 %v1188
        %v1190 = vpop.xlane.xlu0 %1189
        %v1191 = vmax.f32 %v1118, %v1120
        %1192 = vmax.xlane.f32.xlu0 %v1191
        %v1193 = vpop.xlane.xlu0 %1192
        %v1194 = vmax.f32 %v1124, %v1126
        %1195 = vmax.xlane.f32.xlu0 %v1194
        %v1196 = vpop.xlane.xlu0 %1195
        %v1197 = vmax.f32 %v1130, %v1132
        %1198 = vmax.xlane.f32.xlu0 %v1197
        %v1199 = vpop.xlane.xlu0 %1198
        %v1200 = vmax.f32 %v1136, %v1138
        %1201 = vmax.xlane.f32.xlu0 %v1200
        %v1202 = vpop.xlane.xlu0 %1201
        %v1203 = vmax.f32 %v1142, %v1144
        %1204 = vmax.xlane.f32.xlu0 %v1203
        %v1205 = vpop.xlane.xlu0 %1204
        %v1206 = vmax.f32 %v1148, %v1150
        %1207 = vmax.xlane.f32.xlu0 %v1206
        %v1208 = vpop.xlane.xlu0 %1207
        %v1209 = vmax.f32 %v1154, %v1156
        %1210 = vmax.xlane.f32.xlu0 %v1209
        %v1211 = vpop.xlane.xlu0 %1210
        %v1212 = vmax.f32 %v1160, %v1162
        %1213 = vmax.xlane.f32.xlu0 %v1212
        %v1214 = vpop.xlane.xlu0 %1213
        %v1215 = vmax.f32 %v1166, %v1168
        %1216 = vmax.xlane.f32.xlu0 %v1215
        %v1217 = vpop.xlane.xlu0 %1216
        %v1218 = vsub.f32 %v1076, %v1172
        %v1219 = vsub.f32 %v1078, %v1172
        %v1220 = vsub.f32 %v1082, %v1175
        %v1221 = vsub.f32 %v1084, %v1175
        %v1222 = vsub.f32 %v1088, %v1178
        %v1223 = vsub.f32 %v1090, %v1178
        %v1224 = vsub.f32 %v1094, %v1181
        %v1225 = vsub.f32 %v1096, %v1181
        %v1226 = vsub.f32 %v1100, %v1184
        %v1227 = vsub.f32 %v1102, %v1184
        %v1228 = vsub.f32 %v1106, %v1187
        %v1229 = vsub.f32 %v1108, %v1187
        %v1230 = vsub.f32 %v1112, %v1190
        %v1231 = vsub.f32 %v1114, %v1190
        %v1232 = vsub.f32 %v1118, %v1193
        %v1233 = vsub.f32 %v1120, %v1193
        %v1234 = vsub.f32 %v1124, %v1196
        %v1235 = vsub.f32 %v1126, %v1196
        %v1236 = vsub.f32 %v1130, %v1199
        %v1237 = vsub.f32 %v1132, %v1199
        %v1238 = vsub.f32 %v1136, %v1202
        %v1239 = vsub.f32 %v1138, %v1202
        %v1240 = vsub.f32 %v1142, %v1205
        %v1241 = vsub.f32 %v1144, %v1205
        %v1242 = vsub.f32 %v1148, %v1208
        %v1243 = vsub.f32 %v1150, %v1208
        %v1244 = vsub.f32 %v1154, %v1211
        %v1245 = vsub.f32 %v1156, %v1211
        %v1246 = vsub.f32 %v1160, %v1214
        %v1247 = vsub.f32 %v1162, %v1214
        %v1248 = vsub.f32 %v1166, %v1217
        %v1249 = vsub.f32 %v1168, %v1217
        %v1250 = vmul.f32 %v1218, 1.442695
        %v1251 = vpow.pop %v1250
        %v1252 = vmul.f32 %v1219, 1.442695
        %v1253 = vpow.pop %v1252
        %v1254 = vmul.f32 %v1220, 1.442695
        %v1255 = vpow.pop %v1254
        %v1256 = vmul.f32 %v1221, 1.442695
        %v1257 = vpow.pop %v1256
        %v1258 = vmul.f32 %v1222, 1.442695
        %v1259 = vpow.pop %v1258
        %v1260 = vmul.f32 %v1223, 1.442695
        %v1261 = vpow.pop %v1260
        %v1262 = vmul.f32 %v1224, 1.442695
        %v1263 = vpow.pop %v1262
        %v1264 = vmul.f32 %v1225, 1.442695
        %v1265 = vpow.pop %v1264
        %v1266 = vmul.f32 %v1226, 1.442695
        %v1267 = vpow.pop %v1266
        %v1268 = vmul.f32 %v1227, 1.442695
        %v1269 = vpow.pop %v1268
        %v1270 = vmul.f32 %v1228, 1.442695
        %v1271 = vpow.pop %v1270
        %v1272 = vmul.f32 %v1229, 1.442695
        %v1273 = vpow.pop %v1272
        %v1274 = vmul.f32 %v1230, 1.442695
        %v1275 = vpow.pop %v1274
        %v1276 = vmul.f32 %v1231, 1.442695
        %v1277 = vpow.pop %v1276
        %v1278 = vmul.f32 %v1232, 1.442695
        %v1279 = vpow.pop %v1278
        %v1280 = vmul.f32 %v1233, 1.442695
        %v1281 = vpow.pop %v1280
        %v1282 = vmul.f32 %v1234, 1.442695
        %v1283 = vpow.pop %v1282
        %v1284 = vmul.f32 %v1235, 1.442695
        %v1285 = vpow.pop %v1284
        %v1286 = vmul.f32 %v1236, 1.442695
        %v1287 = vpow.pop %v1286
        %v1288 = vmul.f32 %v1237, 1.442695
        %v1289 = vpow.pop %v1288
        %v1290 = vmul.f32 %v1238, 1.442695
        %v1291 = vpow.pop %v1290
        %v1292 = vmul.f32 %v1239, 1.442695
        %v1293 = vpow.pop %v1292
        %v1294 = vmul.f32 %v1240, 1.442695
        %v1295 = vpow.pop %v1294
        %v1296 = vmul.f32 %v1241, 1.442695
        %v1297 = vpow.pop %v1296
        %v1298 = vmul.f32 %v1242, 1.442695
        %v1299 = vpow.pop %v1298
        %v1300 = vmul.f32 %v1243, 1.442695
        %v1301 = vpow.pop %v1300
        %v1302 = vmul.f32 %v1244, 1.442695
        %v1303 = vpow.pop %v1302
        %v1304 = vmul.f32 %v1245, 1.442695
        %v1305 = vpow.pop %v1304
        %v1306 = vmul.f32 %v1246, 1.442695
        %v1307 = vpow.pop %v1306
        %v1308 = vmul.f32 %v1247, 1.442695
        %v1309 = vpow.pop %v1308
        %v1310 = vmul.f32 %v1248, 1.442695
        %v1311 = vpow.pop %v1310
        %v1312 = vmul.f32 %v1249, 1.442695
        %v1313 = vpow.pop %v1312
        %v1314 = vadd.f32 %v1251, %v1253
        %1315 = vadd.xlane.f32.xlu0 %v1314
        %v1316 = vpop.xlane.xlu0 %1315
        %v1317 = vadd.f32 %v1255, %v1257
        %1318 = vadd.xlane.f32.xlu0 %v1317
        %v1319 = vpop.xlane.xlu0 %1318
        %v1320 = vadd.f32 %v1259, %v1261
        %1321 = vadd.xlane.f32.xlu0 %v1320
        %v1322 = vpop.xlane.xlu0 %1321
        %v1323 = vadd.f32 %v1263, %v1265
        %1324 = vadd.xlane.f32.xlu0 %v1323
        %v1325 = vpop.xlane.xlu0 %1324
        %v1326 = vadd.f32 %v1267, %v1269
        %1327 = vadd.xlane.f32.xlu0 %v1326
        %v1328 = vpop.xlane.xlu0 %1327
        %v1329 = vadd.f32 %v1271, %v1273
        %1330 = vadd.xlane.f32.xlu0 %v1329
        %v1331 = vpop.xlane.xlu0 %1330
        %v1332 = vadd.f32 %v1275, %v1277
        %1333 = vadd.xlane.f32.xlu0 %v1332
        %v1334 = vpop.xlane.xlu0 %1333
        %v1335 = vadd.f32 %v1279, %v1281
        %1336 = vadd.xlane.f32.xlu0 %v1335
        %v1337 = vpop.xlane.xlu0 %1336
        %v1338 = vadd.f32 %v1283, %v1285
        %1339 = vadd.xlane.f32.xlu0 %v1338
        %v1340 = vpop.xlane.xlu0 %1339
        %v1341 = vadd.f32 %v1287, %v1289
        %1342 = vadd.xlane.f32.xlu0 %v1341
        %v1343 = vpop.xlane.xlu0 %1342
        %v1344 = vadd.f32 %v1291, %v1293
        %1345 = vadd.xlane.f32.xlu0 %v1344
        %v1346 = vpop.xlane.xlu0 %1345
        %v1347 = vadd.f32 %v1295, %v1297
        %1348 = vadd.xlane.f32.xlu0 %v1347
        %v1349 = vpop.xlane.xlu0 %1348
        %v1350 = vadd.f32 %v1299, %v1301
        %1351 = vadd.xlane.f32.xlu0 %v1350
        %v1352 = vpop.xlane.xlu0 %1351
        %v1353 = vadd.f32 %v1303, %v1305
        %1354 = vadd.xlane.f32.xlu0 %v1353
        %v1355 = vpop.xlane.xlu0 %1354
        %v1356 = vadd.f32 %v1307, %v1309
        %1357 = vadd.xlane.f32.xlu0 %v1356
        %v1358 = vpop.xlane.xlu0 %1357
        %v1359 = vadd.f32 %v1311, %v1313
        %1360 = vadd.xlane.f32.xlu0 %v1359
        %v1361 = vpop.xlane.xlu0 %1360
        %v1362 = vrcp.pop %v1316
        %v1363 = vmul.f32 %v1251, %v1362
        %v1364 = vmul.f32 %v1253, %v1362
        %v1365 = vrcp.pop %v1319
        %v1366 = vmul.f32 %v1255, %v1365
        %v1367 = vmul.f32 %v1257, %v1365
        %v1368 = vrcp.pop %v1322
        %v1369 = vmul.f32 %v1259, %v1368
        %v1370 = vmul.f32 %v1261, %v1368
        %v1371 = vrcp.pop %v1325
        %v1372 = vmul.f32 %v1263, %v1371
        %v1373 = vmul.f32 %v1265, %v1371
        %v1374 = vrcp.pop %v1328
        %v1375 = vmul.f32 %v1267, %v1374
        %v1376 = vmul.f32 %v1269, %v1374
        %v1377 = vrcp.pop %v1331
        %v1378 = vmul.f32 %v1271, %v1377
        %v1379 = vmul.f32 %v1273, %v1377
        %v1380 = vrcp.pop %v1334
        %v1381 = vmul.f32 %v1275, %v1380
        %v1382 = vmul.f32 %v1277, %v1380
        %v1383 = vrcp.pop %v1337
        %v1384 = vmul.f32 %v1279, %v1383
        %v1385 = vmul.f32 %v1281, %v1383
        %v1386 = vrcp.pop %v1340
        %v1387 = vmul.f32 %v1283, %v1386
        %v1388 = vmul.f32 %v1285, %v1386
        %v1389 = vrcp.pop %v1343
        %v1390 = vmul.f32 %v1287, %v1389
        %v1391 = vmul.f32 %v1289, %v1389
        %v1392 = vrcp.pop %v1346
        %v1393 = vmul.f32 %v1291, %v1392
        %v1394 = vmul.f32 %v1293, %v1392
        %v1395 = vrcp.pop %v1349
        %v1396 = vmul.f32 %v1295, %v1395
        %v1397 = vmul.f32 %v1297, %v1395
        %v1398 = vrcp.pop %v1352
        %v1399 = vmul.f32 %v1299, %v1398
        %v1400 = vmul.f32 %v1301, %v1398
        %v1401 = vrcp.pop %v1355
        %v1402 = vmul.f32 %v1303, %v1401
        %v1403 = vmul.f32 %v1305, %v1401
        %v1404 = vrcp.pop %v1358
        %v1405 = vmul.f32 %v1307, %v1404
        %v1406 = vmul.f32 %v1309, %v1404
        %v1407 = vrcp.pop %v1361
        %v1408 = vmul.f32 %v1311, %v1407
        %v1409 = vmul.f32 %v1313, %v1407
        %1410 = vst [vmem:[%s460] sm:$0xff] %v1363
        %1411 = vst [vmem:[%s460 + $0x8] sm:$0xff] %v1364
        %1412 = vst [vmem:[%s460 + $0x10] sm:$0xff] %v1366
        %1413 = vst [vmem:[%s460 + $0x18] sm:$0xff] %v1367
        %1414 = vst [vmem:[%s460 + $0x20] sm:$0xff] %v1369
        %1415 = vst [vmem:[%s460 + $0x28] sm:$0xff] %v1370
        %1416 = vst [vmem:[%s460 + $0x30] sm:$0xff] %v1372
        %1417 = vst [vmem:[%s460 + $0x38] sm:$0xff] %v1373
        %1418 = vst [vmem:[%s460 + $0x40] sm:$0xff] %v1375
        %1419 = vst [vmem:[%s460 + $0x48] sm:$0xff] %v1376
        %1420 = vst [vmem:[%s460 + $0x50] sm:$0xff] %v1378
        %1421 = vst [vmem:[%s460 + $0x58] sm:$0xff] %v1379
        %1422 = vst [vmem:[%s460 + $0x60] sm:$0xff] %v1381
        %1423 = vst [vmem:[%s460 + $0x68] sm:$0xff] %v1382
        %1424 = vst [vmem:[%s460 + $0x70] sm:$0xff] %v1384
        %1425 = vst [vmem:[%s460 + $0x78] sm:$0xff] %v1385
        %1426 = vst [vmem:[%s460 + $0x80] sm:$0xff] %v1387
        %1427 = vst [vmem:[%s460 + $0x88] sm:$0xff] %v1388
        %1428 = vst [vmem:[%s460 + $0x90] sm:$0xff] %v1390
        %1429 = vst [vmem:[%s460 + $0x98] sm:$0xff] %v1391
        %1430 = vst [vmem:[%s460 + $0xa0] sm:$0xff] %v1393
        %1431 = vst [vmem:[%s460 + $0xa8] sm:$0xff] %v1394
        %1432 = vst [vmem:[%s460 + $0xb0] sm:$0xff] %v1396
        %1433 = vst [vmem:[%s460 + $0xb8] sm:$0xff] %v1397
        %1434 = vst [vmem:[%s460 + $0xc0] sm:$0xff] %v1399
        %1435 = vst [vmem:[%s460 + $0xc8] sm:$0xff] %v1400
        %1436 = vst [vmem:[%s460 + $0xd0] sm:$0xff] %v1402
        %1437 = vst [vmem:[%s460 + $0xd8] sm:$0xff] %v1403
        %1438 = vst [vmem:[%s460 + $0xe0] sm:$0xff] %v1405
        %1439 = vst [vmem:[%s460 + $0xe8] sm:$0xff] %v1406
        %1440 = vst [vmem:[%s460 + $0xf0] sm:$0xff] %v1408
        %1441 = vst [vmem:[%s460 + $0xf8] sm:$0xff] %v1409
        %v1442 = vld [vmem:[#allocation3] sm:$0xff]
        %v1443 = vld [vmem:[%s9] sm:$0xf]
        %1445 = vset.pattern.permute.xlu0 0
        %1446 = vperm.xlu0 %1445, %v1443
        %v1447 = vpop.permute.xlu0 %1446
        %v1450 = vcombine.high %v1442, %v1442
        %1452 = vmatprep.subr.mxu0 %v1364
        %1453 = vmatpush1.xpose.msra.mxu0 %v1363
        %1454 = vmatprep.subr.mxu0 %v1367
        %1455 = vmatpush1.xpose.msra.mxu0 %v1366
        %1456 = vmatprep.subr.mxu0 %v1370
        %1457 = vmatpush1.xpose.msra.mxu0 %v1369
        %1458 = vmatprep.subr.mxu0 %v1373
        %1459 = vmatpush1.xpose.msra.mxu0 %v1372
        %1460 = vmatprep.subr.mxu0 %v1376
        %1461 = vmatpush1.xpose.msra.mxu0 %v1375
        %1462 = vmatprep.subr.mxu0 %v1379
        %1463 = vmatpush1.xpose.msra.mxu0 %v1378
        %1464 = vmatprep.subr.mxu0 %v1382
        %1465 = vmatpush1.xpose.msra.mxu0 %v1381
        %1466 = vmatprep.subr.mxu0 %v1385
        %1467 = vmatpush1.xpose.msra.mxu0 %v1384
        %1468 = vmatprep.subr.mxu0 %v1388
        %1469 = vmatpush1.xpose.msra.mxu0 %v1387
        %1470 = vmatprep.subr.mxu0 %v1391
        %1471 = vmatpush1.xpose.msra.mxu0 %v1390
        %1472 = vmatprep.subr.mxu0 %v1394
        %1473 = vmatpush1.xpose.msra.mxu0 %v1393
        %1474 = vmatprep.subr.mxu0 %v1397
        %1475 = vmatpush1.xpose.msra.mxu0 %v1396
        %1476 = vmatprep.subr.mxu0 %v1400
        %1477 = vmatpush1.xpose.msra.mxu0 %v1399
        %1478 = vmatprep.subr.mxu0 %v1403
        %1479 = vmatpush1.xpose.msra.mxu0 %v1402
        %1480 = vmatprep.subr.mxu0 %v1406
        %1481 = vmatpush1.xpose.msra.mxu0 %v1405
        %1482 = vmatprep.subr.mxu0 %v1409
        %1483 = vmatpush1.xpose.msra.mxu0 %v1408
        %1484 = vmatprep.subr.mxu0 0.0
        %1485 = vmatpush1.xpose.msra.mxu0 0.0
        %1486 = vmatprep.subr.mxu0 0.0
        %1487 = vmatpush1.xpose.msra.mxu0 0.0
        %1488 = vmatprep.subr.mxu0 0.0
        %1489 = vmatpush1.xpose.msra.mxu0 0.0
        %1490 = vmatprep.subr.mxu0 0.0
        %1491 = vmatpush1.xpose.msra.mxu0 0.0
        %1492 = vmatprep.subr.mxu0 0.0
        %1493 = vmatpush1.xpose.msra.mxu0 0.0
        %1494 = vmatprep.subr.mxu0 0.0
        %1495 = vmatpush1.xpose.msra.mxu0 0.0
        %1496 = vmatprep.subr.mxu0 0.0
        %1497 = vmatpush1.xpose.msra.mxu0 0.0
        %1498 = vmatprep.subr.mxu0 0.0
        %1499 = vmatpush1.xpose.msra.mxu0 0.0
        %1500 = vmatprep.subr.mxu0 0.0
        %1501 = vmatpush1.xpose.msra.mxu0 0.0
        %1502 = vmatprep.subr.mxu0 0.0
        %1503 = vmatpush1.xpose.msra.mxu0 0.0
        %1504 = vmatprep.subr.mxu0 0.0
        %1505 = vmatpush1.xpose.msra.mxu0 0.0
        %1506 = vmatprep.subr.mxu0 0.0
        %1507 = vmatpush1.xpose.msra.mxu0 0.0
        %1508 = vmatprep.subr.mxu0 0.0
        %1509 = vmatpush1.xpose.msra.mxu0 0.0
        %1510 = vmatprep.subr.mxu0 0.0
        %1511 = vmatpush1.xpose.msra.mxu0 0.0
        %1512 = vmatprep.subr.mxu0 0.0
        %1513 = vmatpush1.xpose.msra.mxu0 0.0
        %1514 = vmatprep.subr.mxu0 0.0
        %1515 = vmatpush1.xpose.msra.mxu0 0.0
        %1516 = vmatprep.mubr.f32.mxu0 %v1450
        %1517 = vmatmul.mubr.f32.gmra.mrb[0].mxu0 %v1442
        %v1518 = vpop.f32.mrb[0].mxu0
        %v1519 = vadd.f32 %v1447, %v1518
        %v1520 = vpop.f32.mrb[0].mxu0
        %1521 = vdwg.mxu0
        %s1522 = sld [smem:[#allocation4]]
        %s1523 = sshra.s32 %s735, 7
        %s1524 = sand.u32 %s735, 127
        %s1525 = smul.addr %s1523, 4
        %s1526 = scalar_lea.vmem %s475, %s1525
        %v1527 = vld [vmem:[%s1526] sm:$0xf]
        %v1528 = vstv %s1522
        %v1529 = vmul.f32 %v1528, %v1519
        %v1530 = vadd.f32 %v1529, %v1527
        %1531 = vst [vmem:[%s453] sm:$0xf] %v1530
        %s1532 = sand.u32 %s296, 1
        %s1533 = scalar_lea.sflag [#allocation6], %s1532
        %s1534 = sand.u32 %s296, 1
        %s1535 = smul.addr %s1534, 4
        %s1536 = scalar_lea.vmem [#allocation5], %s1535
        %s1537 = sand.u32 %s324, 1
        %s1538 = scalar_lea.sflag [#allocation8], %s1537
        %s1539 = sand.u32 %s324, 1
        %s1540 = smul.addr %s1539, 256
        %s1541 = scalar_lea.vmem [#allocation7], %s1540
        // Predicated region
        $region69: #{tpu_custom_call.1} parent=63 // pred_check
          %p1542 = pneg %p306
        $region70: #{tpu_custom_call.1} parent=63 // pred_check_branch
          %1544 = sbr.rel (%p1542) target = $region72
        $region71: #{tpu_custom_call.1} parent=63 // pred_region
          %s1546 = ssub.s32 64, 64
          %1547 = vsyncadd %s1533, %s1546
          %s1548 = smul.addr %s35, 2
          %s1549 = sadd.s32 %s36, %s1548
          %s1550 = smul.addr %s1549, 64
          %s1551 = scalar_lea.hbm %s11, %s1550
          %s1553 = sshll.u32 %s1536, 4
          %s1554 = int_to_ptr.vmem [resolvable:$true] %s1553
          %1556 = dma.vmem_to_hbm [thread:$0]  %s1554, 64, %s1551, %s1533
        $region72: #{tpu_custom_call.1} parent=63 // pred_fallthru
          _
        // Predicated region
        $region73: #{tpu_custom_call.1} parent=63 // pred_check
          %p1557 = pneg %p334
        $region74: #{tpu_custom_call.1} parent=63 // pred_check_branch
          %1559 = sbr.rel (%p1557) target = $region76
        $region75: #{tpu_custom_call.1} parent=63 // pred_region
          %s1560 = smul.u32 16, %s36
          %s1562 = ssub.s32 4096, 4096
          %1563 = vsyncadd %s1538, %s1562
          %s1564 = smul.addr %s1560, 2
          %s1565 = smul.addr %s35, 64
          %s1566 = sadd.s32 %s1564, %s1565
          %s1567 = smul.addr %s1566, 128
          %s1568 = scalar_lea.hbm %s12, %s1567
          %s1569 = sshll.u32 %s1541, 4
          %s1570 = int_to_ptr.vmem [resolvable:$true] %s1569
          %1575 = dma.vmem_to_hbm [thread:$0]  %s1570, 4096, %s1568, %s1538, 256, 256, 16
        $region76: #{tpu_custom_call.1} parent=63 // pred_fallthru
          _
      $region64: #{tpu_custom_call.1} parent=5 // pred_fallthru
        _
      %p1576 = scmp.le.s32.totalorder 2, %s26
      // Predicated region
      $region77: #{tpu_custom_call.1} parent=5 // pred_check
        %p1577 = pneg %p1576
      $region78: #{tpu_custom_call.1} parent=5 // pred_check_branch
        %1579 = sbr.rel (%p1577) target = $region80
      $region79: #{tpu_custom_call.1} parent=5 // pred_region
        %s1580 = ssub.s32 %s26, 2
        // Predicated region
        $region81: #{tpu_custom_call.1} parent=79 // pred_check
          %p1581 = pneg %p312
        $region82: #{tpu_custom_call.1} parent=79 // pred_check_branch
          %1583 = sbr.rel (%p1581) target = $region84
        $region83: #{tpu_custom_call.1} parent=79 // pred_region
          %s1584 = sand.u32 %s297, 1
          %s1585 = scalar_lea.sflag [#allocation6], %s1584
          %s1586 = sand.u32 %s297, 1
          %s1587 = smul.addr %s1586, 4
          %s1588 = scalar_lea.vmem [#allocation5], %s1587
          %1589 = dma.done %s1585, 64
        $region84: #{tpu_custom_call.1} parent=79 // pred_fallthru
          _
        // Predicated region
        $region85: #{tpu_custom_call.1} parent=79 // pred_check
          %p1590 = pneg %p340
        $region86: #{tpu_custom_call.1} parent=79 // pred_check_branch
          %1592 = sbr.rel (%p1590) target = $region88
        $region87: #{tpu_custom_call.1} parent=79 // pred_region
          %s1593 = sand.u32 %s325, 1
          %s1594 = scalar_lea.sflag [#allocation8], %s1593
          %s1595 = sand.u32 %s325, 1
          %s1596 = smul.addr %s1595, 256
          %s1597 = scalar_lea.vmem [#allocation7], %s1596
          %1598 = dma.done %s1594, 4096
        $region88: #{tpu_custom_call.1} parent=79 // pred_fallthru
          _
      $region80: #{tpu_custom_call.1} parent=5 // pred_fallthru
        _
    $region6: #{tpu_custom_call.1} parent=1 // loop_footer
      %s30 = sadd.s32 1, %s26
    $region7: #{tpu_custom_call.1} parent=1 // loop_footer_branch
      %25 = sbr.rel target = $region3
    $region8: #{tpu_custom_call.1} parent=1 // loop_exit
      _
    %1599 = vsyncpa [#allocation6], 1
    %s1600 = scalar_lea.sflag [#allocation6], 1
    %1601 = vsyncpa %s1600, 1
    %1602 = vsyncpa [#allocation8], 1
    %s1603 = scalar_lea.sflag [#allocation8], 1
    %1604 = vsyncpa %s1603, 1

</llo_original>
